<compile_context>
chip_gen: v7x
topology: tpu7x:2x2x1
jax: 0.10.0
libtpu: 0.0.40
codegen_flags: <defaults>
</compile_context>

<pallas_src>
import functools

import numpy as np
import jax
import jax.numpy as jnp
from jax import lax
from jax.experimental import pallas as pl
from jax.experimental.pallas import tpu as pltpu


# ----------------------------------- kernel ----------------------------------

def tfe_kernel(x_ref, mask_ref, wc_ref, bc_ref, w1_ref, b1_ref, w2_ref, b2_ref,
               o_ref, *, W, dot_dtype):
    """Fused TFE forward for one block of images folded into the lane axis.

    x_ref   : (C, L)        activations, L = images_per_block * H * W
    mask_ref: (8, L)        f32 validity masks for the 8 non-center taps
    wc_ref  : (C, 9*C)      self.conv 3x3 weights, tap-stacked along K
    bc_ref  : (C, 1)        self.conv bias
    w1_ref  : (C//2, C)     res[0] 1x1 weight
    b1_ref  : (C//2, 1)     res[0] bias
    w2_ref  : (C, 9*C//2)   res[2] 3x3 weights, tap-stacked along K
    b2_ref  : (C, 1)        res[2] bias
    o_ref   : (C, L)
    """
    f32 = jnp.float32
    L = x_ref.shape[-1]

    # Static per-tap lane shifts; masks are precomputed in the wrapper.
    taps = []            # (shift, mask_row or None) in tap order t = dy*3+dx
    mi = 0
    for dy in range(3):
        for dx in range(3):
            oy, ox = dy - 1, dx - 1
            if oy == 0 and ox == 0:
                taps.append((0, None))
            else:
                taps.append(((-(oy * W + ox)) % L, mi))
                mi += 1

    masks = [mask_ref[pl.ds(k, 1), :] for k in range(8)]     # (1, L) each

    wc = wc_ref[...].astype(dot_dtype)
    w1 = w1_ref[...].astype(dot_dtype)
    w2 = w2_ref[...].astype(dot_dtype)
    bc = bc_ref[...]
    b1 = b1_ref[...]
    b2 = b2_ref[...]

    def stack_windows(v):
        # v: (Cin, L) f32 -> (9*Cin, L): shifted + zero-masked window per tap.
        wins = []
        for shift, midx in taps:
            win = v if shift == 0 else pltpu.roll(v, shift, axis=1)  # XLU
            if midx is not None:
                win = win * masks[midx]                              # in-kernel padding
            wins.append(win)
        return jnp.concatenate(wins, axis=0)

    def conv3x3(v, w, b):
        stk = stack_windows(v).astype(dot_dtype)
        return jnp.dot(w, stk, preferred_element_type=f32) + b       # one MXU matmul

    def conv1x1(v, w, b):
        return jnp.dot(w, v.astype(dot_dtype), preferred_element_type=f32) + b

    x = x_ref[...]
    c1 = conv3x3(x, wc, bc)                       # x = self.conv(x); ori = x
    r = jnp.maximum(conv1x1(c1, w1, b1), 0.0)     # res[0] + ReLU
    r = conv3x3(r, w2, b2)                        # res[2]
    o_ref[...] = conv3x3(c1 + r, wc, bc)          # self.conv(ori + res(x))


# ---------------------------------- wrapper -----------------------------------

def build_tap_masks(h, w, images_per_block):
    """(8, images_per_block*h*w) f32 validity masks for the 8 non-center taps.

    Pixel coords are taken modulo h*w so masks stay image-local after folding
    the batch into the lane axis (cross-image roll wraparound lands only on
    already-masked lanes)."""
    hw = h * w
    p = np.arange(images_per_block * hw, dtype=np.int32) % hw
    px, py = p % w, p // w
    rows = []
    for dy in range(3):
        for dx in range(3):
            oy, ox = dy - 1, dx - 1
            if oy == 0 and ox == 0:
                continue
            valid = ((px + ox) >= 0) & ((px + ox) < w) & ((py + oy) >= 0) & ((py + oy) < h)
            rows.append(valid.astype(np.float32))
    return np.stack(rows, axis=0)


def tfe_forward(x_nchw, kparams, *, images_per_block=None, dot_dtype=jnp.float32):
    n, c, h, w = x_nchw.shape
    hw = h * w
    if images_per_block is None:
        images_per_block = n              # fold whole batch into lanes -> grid=(1,)
    assert n % images_per_block == 0
    num_blocks = n // images_per_block
    L = images_per_block * hw

    # (N,C,H,W) -> (C, N*H*W): channels on sublanes, (image, pixel) on lanes.
    x = jnp.transpose(x_nchw, (1, 0, 2, 3)).reshape(c, n * hw)
    masks = build_tap_masks(h, w, images_per_block)

    args = (x, masks,
            kparams["conv_w"], kparams["conv_b"],
            kparams["res0_w"], kparams["res0_b"],
            kparams["res2_w"], kparams["res2_b"])

    def rep(a):                                        # full-array (replicated) block
        nd = a.ndim
        return pl.BlockSpec(a.shape, lambda i, nd=nd: (0,) * nd)

    in_specs = [pl.BlockSpec((c, L), lambda i: (0, i))]
    in_specs += [rep(a) for a in args[1:]]

    out = pl.pallas_call(
        functools.partial(tfe_kernel, W=w, dot_dtype=dot_dtype),
        grid=(num_blocks,),
        in_specs=in_specs,
        out_specs=pl.BlockSpec((c, L), lambda i: (0, i)),
        out_shape=jax.ShapeDtypeStruct((c, n * hw), jnp.float32),
        compiler_params=pltpu.CompilerParams(dimension_semantics=("parallel",)),
    )(*args)

    return jnp.transpose(out.reshape(c, n, hw), (1, 0, 2)).reshape(n, c, h, w)


# ------------------------- plain-JAX parameter glue --------------------------

def init_torch_params(key, dim):
    """Random weights in PyTorch layouts (OIHW weights, 1-D biases)."""
    ks = jax.random.split(key, 6)
    s = 0.1
    return {
        "conv_w": s * jax.random.normal(ks[0], (dim, dim, 3, 3), jnp.float32),
        "conv_b": s * jax.random.normal(ks[1], (dim,), jnp.float32),
        "res0_w": s * jax.random.normal(ks[2], (dim // 2, dim, 1, 1), jnp.float32),
        "res0_b": s * jax.random.normal(ks[3], (dim // 2,), jnp.float32),
        "res2_w": s * jax.random.normal(ks[4], (dim, dim // 2, 3, 3), jnp.float32),
        "res2_b": s * jax.random.normal(ks[5], (dim,), jnp.float32),
    }


def torch_to_kernel_params(p):
    """PyTorch OIHW -> lane-dense, tap-stacked kernel layouts.

    3x3 weights become (Cout, 9*Cin) with column index t*Cin + cin, t=ky*3+kx,
    matching the kernel's (9*Cin, L) stacked-window operand."""
    co, ci, kh, kw = p["conv_w"].shape
    co2, ci2, _, _ = p["res2_w"].shape
    return {
        "conv_w": jnp.transpose(p["conv_w"], (0, 2, 3, 1)).reshape(co, kh * kw * ci),
        "conv_b": p["conv_b"].reshape(co, 1),
        "res0_w": p["res0_w"][:, :, 0, 0],
        "res0_b": p["res0_b"].reshape(-1, 1),
        "res2_w": jnp.transpose(p["res2_w"], (0, 2, 3, 1)).reshape(co2, 9 * ci2),
        "res2_b": p["res2_b"].reshape(co2, 1),
    }


def tfe_reference(x, p):
    """Pure-XLA reference of the PyTorch TFE.forward (NCHW)."""
    def conv(v, w, b, pad):
        y = lax.conv_general_dilated(
            v, w, (1, 1), ((pad, pad), (pad, pad)),
            dimension_numbers=("NCHW", "OIHW", "NCHW"),
            precision=lax.Precision.HIGHEST)
        return y + b[None, :, None, None]

    c1 = conv(x, p["conv_w"], p["conv_b"], 1)
    r = jnp.maximum(conv(c1, p["res0_w"], p["res0_b"], 0), 0.0)
    r = conv(r, p["res2_w"], p["res2_b"], 1)
    return conv(c1 + r, p["conv_w"], p["conv_b"], 1)


# ----------------------------------- main ------------------------------------

if __name__ == "__main__":
    key = jax.random.PRNGKey(0)
    kx, kp = jax.random.split(key)

    N, C, H, W = 2, 16, 16, 16        # dim=16 -> dim//2=8; H*W=256, L=N*H*W=512
    x = jax.random.normal(kx, (N, C, H, W), jnp.float32)

    torch_params = init_torch_params(kp, C)
    kparams = torch_to_kernel_params(torch_params)
    ref = tfe_reference(x, torch_params)

    # Default config: whole batch folded into the lane axis, single grid step
    # (best for v5e/v6e where the grid is a sequential loop).
    fwd = jax.jit(tfe_forward)
    out = jax.block_until_ready(fwd(x, kparams))
    assert out.shape == (N, C, H, W), out.shape
    assert bool(jnp.isfinite(out).all()), "non-finite output"
    err = float(jnp.max(jnp.abs(out - ref)))
    # f32 dots on the MXU use a multi-pass decomposition; observed error ~1e-5.
    # 1e-3 (vs the old loose 5e-2) still flags any real indexing/padding bug.
    assert err < 1e-3, f"kernel vs reference mismatch (folded batch): {err}"

    # v7x-style config: 2 'parallel' grid steps so work can shard across the
    # two TensorCores (one image's lanes per block).
    fwd2 = jax.jit(functools.partial(tfe_forward, images_per_block=1))
    out2 = jax.block_until_ready(fwd2(x, kparams))
    err2 = float(jnp.max(jnp.abs(out2 - ref)))
    assert err2 < 1e-3, f"kernel vs reference mismatch (2-block grid): {err2}"

    print("KERNEL_OK")
</pallas_src>

<mosaic_0001>
module attributes {stable_mosaic.version = 11 : i64} {
  func.func @tfe_kernel(%arg0: i32, %arg1: memref<16x512xf32, #tpu.memory_space<vmem>>, %arg2: memref<8x512xf32, #tpu.memory_space<vmem>>, %arg3: memref<16x144xf32, #tpu.memory_space<vmem>>, %arg4: memref<16x1xf32, #tpu.memory_space<vmem>>, %arg5: memref<8x16xf32, #tpu.memory_space<vmem>>, %arg6: memref<8x1xf32, #tpu.memory_space<vmem>>, %arg7: memref<16x72xf32, #tpu.memory_space<vmem>>, %arg8: memref<16x1xf32, #tpu.memory_space<vmem>>, %arg9: memref<16x512xf32, #tpu.memory_space<vmem>>) attributes {dimension_semantics = [#tpu.dimension_semantics<parallel>], iteration_bounds = array<i64: 1>, scalar_prefetch = 0 : i64, scratch_operands = 0 : i64, tpu.core_type = #tpu.core_type<tc>, window_params = [{transform_indices = @transform_0, window_bounds = array<i64: 16, 512>}, {pipeline_mode = #tpu.pipeline_mode<synchronous>, transform_indices = @transform_1, window_bounds = array<i64: 8, 512>}, {pipeline_mode = #tpu.pipeline_mode<synchronous>, transform_indices = @transform_2, window_bounds = array<i64: 16, 144>}, {pipeline_mode = #tpu.pipeline_mode<synchronous>, transform_indices = @transform_3, window_bounds = array<i64: 16, 1>}, {pipeline_mode = #tpu.pipeline_mode<synchronous>, transform_indices = @transform_4, window_bounds = array<i64: 8, 16>}, {pipeline_mode = #tpu.pipeline_mode<synchronous>, transform_indices = @transform_5, window_bounds = array<i64: 8, 1>}, {pipeline_mode = #tpu.pipeline_mode<synchronous>, transform_indices = @transform_6, window_bounds = array<i64: 16, 72>}, {pipeline_mode = #tpu.pipeline_mode<synchronous>, transform_indices = @transform_7, window_bounds = array<i64: 16, 1>}, {transform_indices = @transform_8, window_bounds = array<i64: 16, 512>}]} {
    %c0 = arith.constant 0 : index
    %c0_0 = arith.constant 0 : index
    %0 = vector.load %arg2[%c0, %c0_0] : memref<8x512xf32, #tpu.memory_space<vmem>>, vector<1x512xf32>
    %c1 = arith.constant 1 : index
    %c0_1 = arith.constant 0 : index
    %1 = vector.load %arg2[%c1, %c0_1] : memref<8x512xf32, #tpu.memory_space<vmem>>, vector<1x512xf32>
    %c2 = arith.constant 2 : index
    %c0_2 = arith.constant 0 : index
    %2 = vector.load %arg2[%c2, %c0_2] : memref<8x512xf32, #tpu.memory_space<vmem>>, vector<1x512xf32>
    %c3 = arith.constant 3 : index
    %c0_3 = arith.constant 0 : index
    %3 = vector.load %arg2[%c3, %c0_3] : memref<8x512xf32, #tpu.memory_space<vmem>>, vector<1x512xf32>
    %c4 = arith.constant 4 : index
    %c0_4 = arith.constant 0 : index
    %4 = vector.load %arg2[%c4, %c0_4] : memref<8x512xf32, #tpu.memory_space<vmem>>, vector<1x512xf32>
    %c5 = arith.constant 5 : index
    %c0_5 = arith.constant 0 : index
    %5 = vector.load %arg2[%c5, %c0_5] : memref<8x512xf32, #tpu.memory_space<vmem>>, vector<1x512xf32>
    %c6 = arith.constant 6 : index
    %c0_6 = arith.constant 0 : index
    %6 = vector.load %arg2[%c6, %c0_6] : memref<8x512xf32, #tpu.memory_space<vmem>>, vector<1x512xf32>
    %c7 = arith.constant 7 : index
    %c0_7 = arith.constant 0 : index
    %7 = vector.load %arg2[%c7, %c0_7] : memref<8x512xf32, #tpu.memory_space<vmem>>, vector<1x512xf32>
    %c0_8 = arith.constant 0 : index
    %c0_9 = arith.constant 0 : index
    %8 = vector.load %arg3[%c0_8, %c0_9] : memref<16x144xf32, #tpu.memory_space<vmem>>, vector<16x144xf32>
    %c0_10 = arith.constant 0 : index
    %c0_11 = arith.constant 0 : index
    %9 = vector.load %arg5[%c0_10, %c0_11] : memref<8x16xf32, #tpu.memory_space<vmem>>, vector<8x16xf32>
    %c0_12 = arith.constant 0 : index
    %c0_13 = arith.constant 0 : index
    %10 = vector.load %arg7[%c0_12, %c0_13] : memref<16x72xf32, #tpu.memory_space<vmem>>, vector<16x72xf32>
    %c0_14 = arith.constant 0 : index
    %c0_15 = arith.constant 0 : index
    %11 = vector.load %arg4[%c0_14, %c0_15] : memref<16x1xf32, #tpu.memory_space<vmem>>, vector<16x1xf32>
    %c0_16 = arith.constant 0 : index
    %c0_17 = arith.constant 0 : index
    %12 = vector.load %arg6[%c0_16, %c0_17] : memref<8x1xf32, #tpu.memory_space<vmem>>, vector<8x1xf32>
    %c0_18 = arith.constant 0 : index
    %c0_19 = arith.constant 0 : index
    %13 = vector.load %arg8[%c0_18, %c0_19] : memref<16x1xf32, #tpu.memory_space<vmem>>, vector<16x1xf32>
    %c0_20 = arith.constant 0 : index
    %c0_21 = arith.constant 0 : index
    %14 = vector.load %arg1[%c0_20, %c0_21] : memref<16x512xf32, #tpu.memory_space<vmem>>, vector<16x512xf32>
    %c17_i32 = arith.constant 17 : i32
    %15 = tpu.dynamic_rotate %14 by %c17_i32 dim 1 : vector<16x512xf32>, i32 -> vector<16x512xf32>
    %16 = vector.broadcast %0 : vector<1x512xf32> to vector<16x512xf32>
    %17 = arith.mulf %15, %16 : vector<16x512xf32>
    %c16_i32 = arith.constant 16 : i32
    %18 = tpu.dynamic_rotate %14 by %c16_i32 dim 1 : vector<16x512xf32>, i32 -> vector<16x512xf32>
    %19 = vector.broadcast %1 : vector<1x512xf32> to vector<16x512xf32>
    %20 = arith.mulf %18, %19 : vector<16x512xf32>
    %c15_i32 = arith.constant 15 : i32
    %21 = tpu.dynamic_rotate %14 by %c15_i32 dim 1 : vector<16x512xf32>, i32 -> vector<16x512xf32>
    %22 = vector.broadcast %2 : vector<1x512xf32> to vector<16x512xf32>
    %23 = arith.mulf %21, %22 : vector<16x512xf32>
    %c1_i32 = arith.constant 1 : i32
    %24 = tpu.dynamic_rotate %14 by %c1_i32 dim 1 : vector<16x512xf32>, i32 -> vector<16x512xf32>
    %25 = vector.broadcast %3 : vector<1x512xf32> to vector<16x512xf32>
    %26 = arith.mulf %24, %25 : vector<16x512xf32>
    %c511_i32 = arith.constant 511 : i32
    %27 = tpu.dynamic_rotate %14 by %c511_i32 dim 1 : vector<16x512xf32>, i32 -> vector<16x512xf32>
    %28 = vector.broadcast %4 : vector<1x512xf32> to vector<16x512xf32>
    %29 = arith.mulf %27, %28 : vector<16x512xf32>
    %c497_i32 = arith.constant 497 : i32
    %30 = tpu.dynamic_rotate %14 by %c497_i32 dim 1 : vector<16x512xf32>, i32 -> vector<16x512xf32>
    %31 = vector.broadcast %5 : vector<1x512xf32> to vector<16x512xf32>
    %32 = arith.mulf %30, %31 : vector<16x512xf32>
    %c496_i32 = arith.constant 496 : i32
    %33 = tpu.dynamic_rotate %14 by %c496_i32 dim 1 : vector<16x512xf32>, i32 -> vector<16x512xf32>
    %34 = vector.broadcast %6 : vector<1x512xf32> to vector<16x512xf32>
    %35 = arith.mulf %33, %34 : vector<16x512xf32>
    %c495_i32 = arith.constant 495 : i32
    %36 = tpu.dynamic_rotate %14 by %c495_i32 dim 1 : vector<16x512xf32>, i32 -> vector<16x512xf32>
    %37 = vector.broadcast %7 : vector<1x512xf32> to vector<16x512xf32>
    %38 = arith.mulf %36, %37 : vector<16x512xf32>
    %39 = tpu.concatenate %17, %20, %23, %26, %14, %29, %32, %35, %38 in 0 : vector<16x512xf32>, vector<16x512xf32>, vector<16x512xf32>, vector<16x512xf32>, vector<16x512xf32>, vector<16x512xf32>, vector<16x512xf32>, vector<16x512xf32>, vector<16x512xf32> -> vector<144x512xf32>
    %cst = arith.constant dense<0.000000e+00> : vector<16x512xf32>
    %40 = tpu.matmul %8, %39, %cst {dimension_numbers = #tpu.dot_dimension_numbers<[1], [0], [0], [1], [0, 0, 1, 1], [], []>} : vector<16x144xf32>, vector<144x512xf32>, vector<16x512xf32> -> vector<16x512xf32>
    %41 = vector.broadcast %11 : vector<16x1xf32> to vector<16x512xf32>
    %42 = arith.addf %40, %41 : vector<16x512xf32>
    %cst_22 = arith.constant dense<0.000000e+00> : vector<8x512xf32>
    %43 = tpu.matmul %9, %42, %cst_22 {dimension_numbers = #tpu.dot_dimension_numbers<[1], [0], [0], [1], [0, 0, 1, 1], [], []>} : vector<8x16xf32>, vector<16x512xf32>, vector<8x512xf32> -> vector<8x512xf32>
    %44 = vector.broadcast %12 : vector<8x1xf32> to vector<8x512xf32>
    %45 = arith.addf %43, %44 : vector<8x512xf32>
    %cst_23 = arith.constant 0.000000e+00 : f32
    %46 = vector.broadcast %cst_23 : f32 to vector<8x512xf32>
    %47 = arith.maximumf %45, %46 : vector<8x512xf32>
    %c17_i32_24 = arith.constant 17 : i32
    %48 = tpu.dynamic_rotate %47 by %c17_i32_24 dim 1 : vector<8x512xf32>, i32 -> vector<8x512xf32>
    %49 = vector.broadcast %0 : vector<1x512xf32> to vector<8x512xf32>
    %50 = arith.mulf %48, %49 : vector<8x512xf32>
    %c16_i32_25 = arith.constant 16 : i32
    %51 = tpu.dynamic_rotate %47 by %c16_i32_25 dim 1 : vector<8x512xf32>, i32 -> vector<8x512xf32>
    %52 = vector.broadcast %1 : vector<1x512xf32> to vector<8x512xf32>
    %53 = arith.mulf %51, %52 : vector<8x512xf32>
    %c15_i32_26 = arith.constant 15 : i32
    %54 = tpu.dynamic_rotate %47 by %c15_i32_26 dim 1 : vector<8x512xf32>, i32 -> vector<8x512xf32>
    %55 = vector.broadcast %2 : vector<1x512xf32> to vector<8x512xf32>
    %56 = arith.mulf %54, %55 : vector<8x512xf32>
    %c1_i32_27 = arith.constant 1 : i32
    %57 = tpu.dynamic_rotate %47 by %c1_i32_27 dim 1 : vector<8x512xf32>, i32 -> vector<8x512xf32>
    %58 = vector.broadcast %3 : vector<1x512xf32> to vector<8x512xf32>
    %59 = arith.mulf %57, %58 : vector<8x512xf32>
    %c511_i32_28 = arith.constant 511 : i32
    %60 = tpu.dynamic_rotate %47 by %c511_i32_28 dim 1 : vector<8x512xf32>, i32 -> vector<8x512xf32>
    %61 = vector.broadcast %4 : vector<1x512xf32> to vector<8x512xf32>
    %62 = arith.mulf %60, %61 : vector<8x512xf32>
    %c497_i32_29 = arith.constant 497 : i32
    %63 = tpu.dynamic_rotate %47 by %c497_i32_29 dim 1 : vector<8x512xf32>, i32 -> vector<8x512xf32>
    %64 = vector.broadcast %5 : vector<1x512xf32> to vector<8x512xf32>
    %65 = arith.mulf %63, %64 : vector<8x512xf32>
    %c496_i32_30 = arith.constant 496 : i32
    %66 = tpu.dynamic_rotate %47 by %c496_i32_30 dim 1 : vector<8x512xf32>, i32 -> vector<8x512xf32>
    %67 = vector.broadcast %6 : vector<1x512xf32> to vector<8x512xf32>
    %68 = arith.mulf %66, %67 : vector<8x512xf32>
    %c495_i32_31 = arith.constant 495 : i32
    %69 = tpu.dynamic_rotate %47 by %c495_i32_31 dim 1 : vector<8x512xf32>, i32 -> vector<8x512xf32>
    %70 = vector.broadcast %7 : vector<1x512xf32> to vector<8x512xf32>
    %71 = arith.mulf %69, %70 : vector<8x512xf32>
    %72 = tpu.concatenate %50, %53, %56, %59, %47, %62, %65, %68, %71 in 0 : vector<8x512xf32>, vector<8x512xf32>, vector<8x512xf32>, vector<8x512xf32>, vector<8x512xf32>, vector<8x512xf32>, vector<8x512xf32>, vector<8x512xf32>, vector<8x512xf32> -> vector<72x512xf32>
    %cst_32 = arith.constant dense<0.000000e+00> : vector<16x512xf32>
    %73 = tpu.matmul %10, %72, %cst_32 {dimension_numbers = #tpu.dot_dimension_numbers<[1], [0], [0], [1], [0, 0, 1, 1], [], []>} : vector<16x72xf32>, vector<72x512xf32>, vector<16x512xf32> -> vector<16x512xf32>
    %74 = vector.broadcast %13 : vector<16x1xf32> to vector<16x512xf32>
    %75 = arith.addf %73, %74 : vector<16x512xf32>
    %76 = arith.addf %42, %75 : vector<16x512xf32>
    %c17_i32_33 = arith.constant 17 : i32
    %77 = tpu.dynamic_rotate %76 by %c17_i32_33 dim 1 : vector<16x512xf32>, i32 -> vector<16x512xf32>
    %78 = vector.broadcast %0 : vector<1x512xf32> to vector<16x512xf32>
    %79 = arith.mulf %77, %78 : vector<16x512xf32>
    %c16_i32_34 = arith.constant 16 : i32
    %80 = tpu.dynamic_rotate %76 by %c16_i32_34 dim 1 : vector<16x512xf32>, i32 -> vector<16x512xf32>
    %81 = vector.broadcast %1 : vector<1x512xf32> to vector<16x512xf32>
    %82 = arith.mulf %80, %81 : vector<16x512xf32>
    %c15_i32_35 = arith.constant 15 : i32
    %83 = tpu.dynamic_rotate %76 by %c15_i32_35 dim 1 : vector<16x512xf32>, i32 -> vector<16x512xf32>
    %84 = vector.broadcast %2 : vector<1x512xf32> to vector<16x512xf32>
    %85 = arith.mulf %83, %84 : vector<16x512xf32>
    %c1_i32_36 = arith.constant 1 : i32
    %86 = tpu.dynamic_rotate %76 by %c1_i32_36 dim 1 : vector<16x512xf32>, i32 -> vector<16x512xf32>
    %87 = vector.broadcast %3 : vector<1x512xf32> to vector<16x512xf32>
    %88 = arith.mulf %86, %87 : vector<16x512xf32>
    %c511_i32_37 = arith.constant 511 : i32
    %89 = tpu.dynamic_rotate %76 by %c511_i32_37 dim 1 : vector<16x512xf32>, i32 -> vector<16x512xf32>
    %90 = vector.broadcast %4 : vector<1x512xf32> to vector<16x512xf32>
    %91 = arith.mulf %89, %90 : vector<16x512xf32>
    %c497_i32_38 = arith.constant 497 : i32
    %92 = tpu.dynamic_rotate %76 by %c497_i32_38 dim 1 : vector<16x512xf32>, i32 -> vector<16x512xf32>
    %93 = vector.broadcast %5 : vector<1x512xf32> to vector<16x512xf32>
    %94 = arith.mulf %92, %93 : vector<16x512xf32>
    %c496_i32_39 = arith.constant 496 : i32
    %95 = tpu.dynamic_rotate %76 by %c496_i32_39 dim 1 : vector<16x512xf32>, i32 -> vector<16x512xf32>
    %96 = vector.broadcast %6 : vector<1x512xf32> to vector<16x512xf32>
    %97 = arith.mulf %95, %96 : vector<16x512xf32>
    %c495_i32_40 = arith.constant 495 : i32
    %98 = tpu.dynamic_rotate %76 by %c495_i32_40 dim 1 : vector<16x512xf32>, i32 -> vector<16x512xf32>
    %99 = vector.broadcast %7 : vector<1x512xf32> to vector<16x512xf32>
    %100 = arith.mulf %98, %99 : vector<16x512xf32>
    %101 = tpu.concatenate %79, %82, %85, %88, %76, %91, %94, %97, %100 in 0 : vector<16x512xf32>, vector<16x512xf32>, vector<16x512xf32>, vector<16x512xf32>, vector<16x512xf32>, vector<16x512xf32>, vector<16x512xf32>, vector<16x512xf32>, vector<16x512xf32> -> vector<144x512xf32>
    %cst_41 = arith.constant dense<0.000000e+00> : vector<16x512xf32>
    %102 = tpu.matmul %8, %101, %cst_41 {dimension_numbers = #tpu.dot_dimension_numbers<[1], [0], [0], [1], [0, 0, 1, 1], [], []>} : vector<16x144xf32>, vector<144x512xf32>, vector<16x512xf32> -> vector<16x512xf32>
    %103 = vector.broadcast %11 : vector<16x1xf32> to vector<16x512xf32>
    %104 = arith.addf %102, %103 : vector<16x512xf32>
    %c0_42 = arith.constant 0 : index
    %c0_43 = arith.constant 0 : index
    %105 = vector.load %arg9[%c0_42, %c0_43] : memref<16x512xf32, #tpu.memory_space<vmem>>, vector<16x512xf32>
    tpu.vector_store %arg9[%c0_42, %c0_43], %104 {strides = array<i32>} : memref<16x512xf32, #tpu.memory_space<vmem>>, vector<16x512xf32>,
    return
  }
  func.func @transform_0(%arg0: i32) -> (i32, i32) {
    %c0_i32 = arith.constant 0 : i32
    %c0_i32_0 = arith.constant 0 : i32
    return %c0_i32, %arg0 : i32, i32
  }
  func.func @transform_1(%arg0: i32) -> (i32, i32) {
    %c0_i32 = arith.constant 0 : i32
    %c0_i32_0 = arith.constant 0 : i32
    %c0_i32_1 = arith.constant 0 : i32
    return %c0_i32, %c0_i32_0 : i32, i32
  }
  func.func @transform_2(%arg0: i32) -> (i32, i32) {
    %c0_i32 = arith.constant 0 : i32
    %c0_i32_0 = arith.constant 0 : i32
    %c0_i32_1 = arith.constant 0 : i32
    return %c0_i32, %c0_i32_0 : i32, i32
  }
  func.func @transform_3(%arg0: i32) -> (i32, i32) {
    %c0_i32 = arith.constant 0 : i32
    %c0_i32_0 = arith.constant 0 : i32
    %c0_i32_1 = arith.constant 0 : i32
    return %c0_i32, %c0_i32_0 : i32, i32
  }
  func.func @transform_4(%arg0: i32) -> (i32, i32) {
    %c0_i32 = arith.constant 0 : i32
    %c0_i32_0 = arith.constant 0 : i32
    %c0_i32_1 = arith.constant 0 : i32
    return %c0_i32, %c0_i32_0 : i32, i32
  }
  func.func @transform_5(%arg0: i32) -> (i32, i32) {
    %c0_i32 = arith.constant 0 : i32
    %c0_i32_0 = arith.constant 0 : i32
    %c0_i32_1 = arith.constant 0 : i32
    return %c0_i32, %c0_i32_0 : i32, i32
  }
  func.func @transform_6(%arg0: i32) -> (i32, i32) {
    %c0_i32 = arith.constant 0 : i32
    %c0_i32_0 = arith.constant 0 : i32
    %c0_i32_1 = arith.constant 0 : i32
    return %c0_i32, %c0_i32_0 : i32, i32
  }
  func.func @transform_7(%arg0: i32) -> (i32, i32) {
    %c0_i32 = arith.constant 0 : i32
    %c0_i32_0 = arith.constant 0 : i32
    %c0_i32_1 = arith.constant 0 : i32
    return %c0_i32, %c0_i32_0 : i32, i32
  }
  func.func @transform_8(%arg0: i32) -> (i32, i32) {
    %c0_i32 = arith.constant 0 : i32
    %c0_i32_0 = arith.constant 0 : i32
    return %c0_i32, %arg0 : i32, i32
  }
}

</mosaic_0001>

<llo_original>
// kernel: tfe_forward.1
$region0: #{tfe_forward.1}
  #allocation0 [shape = 'u32[]', space=smem, size = 0x4, offset = 0x4, fixed_abs, tag = 'smem constant byte address 0x4 - core index']
  #allocation1 [shape = 'u32[144,128]{1,0:T(1,128)}', space=vmem, size = 0x12000, scoped, tag = 'internal scratch']
  %s0 = inlined_call_operand.vmem [shape: f32[16,512], index: 0, kind: input, shape index: {}]
  %s1 = inlined_call_operand.vmem [shape: f32[8,512], index: 1, kind: input, shape index: {}]
  %s2 = inlined_call_operand.vmem [shape: f32[16,144], index: 2, kind: input, shape index: {}]
  %s3 = inlined_call_operand.vmem [shape: f32[16,1], index: 3, kind: input, shape index: {}]
  %s4 = inlined_call_operand.vmem [shape: f32[8,16], index: 4, kind: input, shape index: {}]
  %s5 = inlined_call_operand.vmem [shape: f32[8,1], index: 5, kind: input, shape index: {}]
  %s6 = inlined_call_operand.vmem [shape: f32[16,72], index: 6, kind: input, shape index: {}]
  %s7 = inlined_call_operand.vmem [shape: f32[16,1], index: 7, kind: input, shape index: {}]
  %s8 = inlined_call_operand.vmem [shape: f32[16,512], index: 8, kind: output, shape index: {}]
  %s9 = sld [smem:[#allocation0]]
  $region42: #{tfe_forward.1} parent=0
    _
  %s11 = ssub.s32 1, %s9
  %s12 = scalar_select 0, %s11, %s9
  // Predicated region
  $region2: #{tfe_forward.1} parent=0 // pred_check
    _
  $region3: #{tfe_forward.1} parent=0 // pred_check_branch
    %14 = sbr.rel (0) target = $region5
  $region4: #{tfe_forward.1} parent=0 // pred_region
    _
  $region5: #{tfe_forward.1} parent=0 // pred_fallthru
    _
  // Predicated region
  $region6: #{tfe_forward.1} parent=0 // pred_check
    _
  $region7: #{tfe_forward.1} parent=0 // pred_check_branch
    %16 = sbr.rel (0) target = $region9
  $region8: #{tfe_forward.1} parent=0 // pred_region
    _
  $region9: #{tfe_forward.1} parent=0 // pred_fallthru
    _
  // Predicated region
  $region10: #{tfe_forward.1} parent=0 // pred_check
    _
  $region11: #{tfe_forward.1} parent=0 // pred_check_branch
    %18 = sbr.rel (0) target = $region13
  $region12: #{tfe_forward.1} parent=0 // pred_region
    _
  $region13: #{tfe_forward.1} parent=0 // pred_fallthru
    _
  // Predicated region
  $region14: #{tfe_forward.1} parent=0 // pred_check
    _
  $region15: #{tfe_forward.1} parent=0 // pred_check_branch
    %20 = sbr.rel (0) target = $region17
  $region16: #{tfe_forward.1} parent=0 // pred_region
    _
  $region17: #{tfe_forward.1} parent=0 // pred_fallthru
    _
  // Predicated region
  $region18: #{tfe_forward.1} parent=0 // pred_check
    _
  $region19: #{tfe_forward.1} parent=0 // pred_check_branch
    %22 = sbr.rel (0) target = $region21
  $region20: #{tfe_forward.1} parent=0 // pred_region
    _
  $region21: #{tfe_forward.1} parent=0 // pred_fallthru
    _
  // Predicated region
  $region22: #{tfe_forward.1} parent=0 // pred_check
    _
  $region23: #{tfe_forward.1} parent=0 // pred_check_branch
    %24 = sbr.rel (0) target = $region25
  $region24: #{tfe_forward.1} parent=0 // pred_region
    _
  $region25: #{tfe_forward.1} parent=0 // pred_fallthru
    _
  // Predicated region
  $region26: #{tfe_forward.1} parent=0 // pred_check
    _
  $region27: #{tfe_forward.1} parent=0 // pred_check_branch
    %26 = sbr.rel (0) target = $region29
  $region28: #{tfe_forward.1} parent=0 // pred_region
    _
  $region29: #{tfe_forward.1} parent=0 // pred_fallthru
    _
  // Predicated region
  $region30: #{tfe_forward.1} parent=0 // pred_check
    _
  $region31: #{tfe_forward.1} parent=0 // pred_check_branch
    %28 = sbr.rel (0) target = $region33
  $region32: #{tfe_forward.1} parent=0 // pred_region
    _
  $region33: #{tfe_forward.1} parent=0 // pred_fallthru
    _
  %v29 = vld [vmem:[%s1] ss:$8 sm:$0xf]
  %s30 = scalar_lea.vmem %s1, 1
  %v31 = vld [vmem:[%s30] ss:$8 sm:$0xf]
  %s32 = scalar_lea.vmem %s1, 2
  %v33 = vld [vmem:[%s32] ss:$8 sm:$0xf]
  %s34 = scalar_lea.vmem %s1, 3
  %v35 = vld [vmem:[%s34] ss:$8 sm:$0xf]
  %s36 = scalar_lea.vmem %s1, 4
  %v37 = vld [vmem:[%s36] ss:$8 sm:$0xf]
  %s38 = scalar_lea.vmem %s1, 5
  %v39 = vld [vmem:[%s38] ss:$8 sm:$0xf]
  %s40 = scalar_lea.vmem %s1, 6
  %v41 = vld [vmem:[%s40] ss:$8 sm:$0xf]
  %s42 = scalar_lea.vmem %s1, 7
  %v43 = vld [vmem:[%s42] ss:$8 sm:$0xf]
  %v44 = vld [vmem:[%s2] sm:$0xff]
  %v45 = vld [vmem:[%s2 + $0x8] sm:$0xff]
  %v46 = vld [vmem:[%s2 + $0x10] sm:$0xff]
  %v47 = vld [vmem:[%s2 + $0x18] sm:$0xff]
  %v48 = vld [vmem:[%s4] sm:$0xff]
  %v49 = vld [vmem:[%s6] sm:$0xff]
  %v50 = vld [vmem:[%s6 + $0x8] sm:$0xff]
  %v51 = vld [vmem:[%s3] sm:$0xff]
  %v52 = vld [vmem:[%s3 + $0x8] sm:$0xff]
  %v53 = vld [vmem:[%s5] sm:$0xff]
  %v54 = vld [vmem:[%s7] sm:$0xff]
  %v55 = vld [vmem:[%s7 + $0x8] sm:$0xff]
  %v56 = vld [vmem:[%s0] sm:$0xff]
  %v57 = vld [vmem:[%s0 + $0x8] sm:$0xff]
  %v58 = vld [vmem:[%s0 + $0x10] sm:$0xff]
  %v59 = vld [vmem:[%s0 + $0x18] sm:$0xff]
  %v60 = vld [vmem:[%s0 + $0x20] sm:$0xff]
  %v61 = vld [vmem:[%s0 + $0x28] sm:$0xff]
  %v62 = vld [vmem:[%s0 + $0x30] sm:$0xff]
  %v63 = vld [vmem:[%s0 + $0x38] sm:$0xff]
  %64 = vrot.lane.b32.xlu0 %v56, 17
  %v65 = vpop.permute.xlu0 %64
  %66 = vrot.lane.b32.xlu0 %v60, 17
  %v67 = vpop.permute.xlu0 %66
  %68 = vrot.lane.b32.xlu0 %v57, 17
  %v69 = vpop.permute.xlu0 %68
  %70 = vrot.lane.b32.xlu0 %v61, 17
  %v71 = vpop.permute.xlu0 %70
  %72 = vrot.lane.b32.xlu0 %v58, 17
  %v73 = vpop.permute.xlu0 %72
  %74 = vrot.lane.b32.xlu0 %v62, 17
  %v75 = vpop.permute.xlu0 %74
  %76 = vrot.lane.b32.xlu0 %v59, 17
  %v77 = vpop.permute.xlu0 %76
  %78 = vrot.lane.b32.xlu0 %v63, 17
  %v79 = vpop.permute.xlu0 %78
  %v80 = vlaneseq
  %v81 = vand.u32 %v80, 127
  %vm82 = vcmp.lt.s32.totalorder %v81, 17
  %v83 = vsel %vm82, %v73, %v77
  %v84 = vsel %vm82, %v75, %v79
  %v85 = vsel %vm82, %v69, %v73
  %v86 = vsel %vm82, %v71, %v75
  %v87 = vsel %vm82, %v65, %v69
  %v88 = vsel %vm82, %v67, %v71
  %v89 = vsel %vm82, %v77, %v65
  %v90 = vsel %vm82, %v79, %v67
  %v92 = vlaneseq
  %v93 = vshrl.u32 %v92, 7
  %v94 = vsub.s32 0, %v93
  %v95 = vrot.slane %v29, %v94
  %v96 = vlaneseq
  %v97 = vshrl.u32 %v96, 7
  %v98 = vsub.s32 1, %v97
  %v99 = vrot.slane %v29, %v98
  %v100 = vlaneseq
  %v101 = vshrl.u32 %v100, 7
  %v102 = vsub.s32 2, %v101
  %v103 = vrot.slane %v29, %v102
  %v104 = vlaneseq
  %v105 = vshrl.u32 %v104, 7
  %v106 = vsub.s32 3, %v105
  %v107 = vrot.slane %v29, %v106
  %v112 = vmul.f32 %v89, %v95
  %v113 = vmul.f32 %v87, %v99
  %v114 = vmul.f32 %v85, %v103
  %v115 = vmul.f32 %v83, %v107
  %v116 = vmul.f32 %v90, %v95
  %v117 = vmul.f32 %v88, %v99
  %v118 = vmul.f32 %v86, %v103
  %v119 = vmul.f32 %v84, %v107
  %120 = vrot.lane.b32.xlu0 %v56, 16
  %v121 = vpop.permute.xlu0 %120
  %122 = vrot.lane.b32.xlu0 %v60, 16
  %v123 = vpop.permute.xlu0 %122
  %124 = vrot.lane.b32.xlu0 %v57, 16
  %v125 = vpop.permute.xlu0 %124
  %126 = vrot.lane.b32.xlu0 %v61, 16
  %v127 = vpop.permute.xlu0 %126
  %128 = vrot.lane.b32.xlu0 %v58, 16
  %v129 = vpop.permute.xlu0 %128
  %130 = vrot.lane.b32.xlu0 %v62, 16
  %v131 = vpop.permute.xlu0 %130
  %132 = vrot.lane.b32.xlu0 %v59, 16
  %v133 = vpop.permute.xlu0 %132
  %134 = vrot.lane.b32.xlu0 %v63, 16
  %v135 = vpop.permute.xlu0 %134
  %vm136 = vcmp.lt.s32.totalorder %v81, 16
  %v137 = vsel %vm136, %v129, %v133
  %v138 = vsel %vm136, %v131, %v135
  %v139 = vsel %vm136, %v125, %v129
  %v140 = vsel %vm136, %v127, %v131
  %v141 = vsel %vm136, %v121, %v125
  %v142 = vsel %vm136, %v123, %v127
  %v143 = vsel %vm136, %v133, %v121
  %v144 = vsel %vm136, %v135, %v123
  %v146 = vlaneseq
  %v147 = vshrl.u32 %v146, 7
  %v148 = vsub.s32 0, %v147
  %v149 = vrot.slane %v31, %v148
  %v150 = vlaneseq
  %v151 = vshrl.u32 %v150, 7
  %v152 = vsub.s32 1, %v151
  %v153 = vrot.slane %v31, %v152
  %v154 = vlaneseq
  %v155 = vshrl.u32 %v154, 7
  %v156 = vsub.s32 2, %v155
  %v157 = vrot.slane %v31, %v156
  %v158 = vlaneseq
  %v159 = vshrl.u32 %v158, 7
  %v160 = vsub.s32 3, %v159
  %v161 = vrot.slane %v31, %v160
  %v166 = vmul.f32 %v143, %v149
  %v167 = vmul.f32 %v141, %v153
  %v168 = vmul.f32 %v139, %v157
  %v169 = vmul.f32 %v137, %v161
  %v170 = vmul.f32 %v144, %v149
  %v171 = vmul.f32 %v142, %v153
  %v172 = vmul.f32 %v140, %v157
  %v173 = vmul.f32 %v138, %v161
  %174 = vrot.lane.b32.xlu0 %v56, 15
  %v175 = vpop.permute.xlu0 %174
  %176 = vrot.lane.b32.xlu0 %v60, 15
  %v177 = vpop.permute.xlu0 %176
  %178 = vrot.lane.b32.xlu0 %v57, 15
  %v179 = vpop.permute.xlu0 %178
  %180 = vrot.lane.b32.xlu0 %v61, 15
  %v181 = vpop.permute.xlu0 %180
  %182 = vrot.lane.b32.xlu0 %v58, 15
  %v183 = vpop.permute.xlu0 %182
  %184 = vrot.lane.b32.xlu0 %v62, 15
  %v185 = vpop.permute.xlu0 %184
  %186 = vrot.lane.b32.xlu0 %v59, 15
  %v187 = vpop.permute.xlu0 %186
  %188 = vrot.lane.b32.xlu0 %v63, 15
  %v189 = vpop.permute.xlu0 %188
  %vm190 = vcmp.lt.s32.totalorder %v81, 15
  %v191 = vsel %vm190, %v183, %v187
  %v192 = vsel %vm190, %v185, %v189
  %v193 = vsel %vm190, %v179, %v183
  %v194 = vsel %vm190, %v181, %v185
  %v195 = vsel %vm190, %v175, %v179
  %v196 = vsel %vm190, %v177, %v181
  %v197 = vsel %vm190, %v187, %v175
  %v198 = vsel %vm190, %v189, %v177
  %v200 = vlaneseq
  %v201 = vshrl.u32 %v200, 7
  %v202 = vsub.s32 0, %v201
  %v203 = vrot.slane %v33, %v202
  %v204 = vlaneseq
  %v205 = vshrl.u32 %v204, 7
  %v206 = vsub.s32 1, %v205
  %v207 = vrot.slane %v33, %v206
  %v208 = vlaneseq
  %v209 = vshrl.u32 %v208, 7
  %v210 = vsub.s32 2, %v209
  %v211 = vrot.slane %v33, %v210
  %v212 = vlaneseq
  %v213 = vshrl.u32 %v212, 7
  %v214 = vsub.s32 3, %v213
  %v215 = vrot.slane %v33, %v214
  %v220 = vmul.f32 %v197, %v203
  %v221 = vmul.f32 %v195, %v207
  %v222 = vmul.f32 %v193, %v211
  %v223 = vmul.f32 %v191, %v215
  %v224 = vmul.f32 %v198, %v203
  %v225 = vmul.f32 %v196, %v207
  %v226 = vmul.f32 %v194, %v211
  %v227 = vmul.f32 %v192, %v215
  %228 = vrot.lane.b32.xlu0 %v56, 1
  %v229 = vpop.permute.xlu0 %228
  %230 = vrot.lane.b32.xlu0 %v60, 1
  %v231 = vpop.permute.xlu0 %230
  %232 = vrot.lane.b32.xlu0 %v57, 1
  %v233 = vpop.permute.xlu0 %232
  %234 = vrot.lane.b32.xlu0 %v61, 1
  %v235 = vpop.permute.xlu0 %234
  %236 = vrot.lane.b32.xlu0 %v58, 1
  %v237 = vpop.permute.xlu0 %236
  %238 = vrot.lane.b32.xlu0 %v62, 1
  %v239 = vpop.permute.xlu0 %238
  %240 = vrot.lane.b32.xlu0 %v59, 1
  %v241 = vpop.permute.xlu0 %240
  %242 = vrot.lane.b32.xlu0 %v63, 1
  %v243 = vpop.permute.xlu0 %242
  %vm244 = vcmp.lt.s32.totalorder %v81, 1
  %v245 = vsel %vm244, %v237, %v241
  %v246 = vsel %vm244, %v239, %v243
  %v247 = vsel %vm244, %v233, %v237
  %v248 = vsel %vm244, %v235, %v239
  %v249 = vsel %vm244, %v229, %v233
  %v250 = vsel %vm244, %v231, %v235
  %v251 = vsel %vm244, %v241, %v229
  %v252 = vsel %vm244, %v243, %v231
  %v254 = vlaneseq
  %v255 = vshrl.u32 %v254, 7
  %v256 = vsub.s32 0, %v255
  %v257 = vrot.slane %v35, %v256
  %v258 = vlaneseq
  %v259 = vshrl.u32 %v258, 7
  %v260 = vsub.s32 1, %v259
  %v261 = vrot.slane %v35, %v260
  %v262 = vlaneseq
  %v263 = vshrl.u32 %v262, 7
  %v264 = vsub.s32 2, %v263
  %v265 = vrot.slane %v35, %v264
  %v266 = vlaneseq
  %v267 = vshrl.u32 %v266, 7
  %v268 = vsub.s32 3, %v267
  %v269 = vrot.slane %v35, %v268
  %v274 = vmul.f32 %v251, %v257
  %v275 = vmul.f32 %v249, %v261
  %v276 = vmul.f32 %v247, %v265
  %v277 = vmul.f32 %v245, %v269
  %v278 = vmul.f32 %v252, %v257
  %v279 = vmul.f32 %v250, %v261
  %v280 = vmul.f32 %v248, %v265
  %v281 = vmul.f32 %v246, %v269
  %282 = vrot.lane.b32.xlu0 %v56, 127
  %v283 = vpop.permute.xlu0 %282
  %284 = vrot.lane.b32.xlu0 %v60, 127
  %v285 = vpop.permute.xlu0 %284
  %286 = vrot.lane.b32.xlu0 %v57, 127
  %v287 = vpop.permute.xlu0 %286
  %288 = vrot.lane.b32.xlu0 %v61, 127
  %v289 = vpop.permute.xlu0 %288
  %290 = vrot.lane.b32.xlu0 %v58, 127
  %v291 = vpop.permute.xlu0 %290
  %292 = vrot.lane.b32.xlu0 %v62, 127
  %v293 = vpop.permute.xlu0 %292
  %294 = vrot.lane.b32.xlu0 %v59, 127
  %v295 = vpop.permute.xlu0 %294
  %296 = vrot.lane.b32.xlu0 %v63, 127
  %v297 = vpop.permute.xlu0 %296
  %vm298 = vcmp.lt.s32.totalorder %v81, 127
  %v299 = vsel %vm298, %v291, %v295
  %v300 = vsel %vm298, %v293, %v297
  %v301 = vsel %vm298, %v287, %v291
  %v302 = vsel %vm298, %v289, %v293
  %v303 = vsel %vm298, %v283, %v287
  %v304 = vsel %vm298, %v285, %v289
  %v305 = vsel %vm298, %v295, %v283
  %v306 = vsel %vm298, %v297, %v285
  %v308 = vlaneseq
  %v309 = vshrl.u32 %v308, 7
  %v310 = vsub.s32 0, %v309
  %v311 = vrot.slane %v37, %v310
  %v312 = vlaneseq
  %v313 = vshrl.u32 %v312, 7
  %v314 = vsub.s32 1, %v313
  %v315 = vrot.slane %v37, %v314
  %v316 = vlaneseq
  %v317 = vshrl.u32 %v316, 7
  %v318 = vsub.s32 2, %v317
  %v319 = vrot.slane %v37, %v318
  %v320 = vlaneseq
  %v321 = vshrl.u32 %v320, 7
  %v322 = vsub.s32 3, %v321
  %v323 = vrot.slane %v37, %v322
  %v328 = vmul.f32 %v303, %v311
  %v329 = vmul.f32 %v301, %v315
  %v330 = vmul.f32 %v299, %v319
  %v331 = vmul.f32 %v305, %v323
  %v332 = vmul.f32 %v304, %v311
  %v333 = vmul.f32 %v302, %v315
  %v334 = vmul.f32 %v300, %v319
  %v335 = vmul.f32 %v306, %v323
  %336 = vrot.lane.b32.xlu0 %v56, 113
  %v337 = vpop.permute.xlu0 %336
  %338 = vrot.lane.b32.xlu0 %v60, 113
  %v339 = vpop.permute.xlu0 %338
  %340 = vrot.lane.b32.xlu0 %v57, 113
  %v341 = vpop.permute.xlu0 %340
  %342 = vrot.lane.b32.xlu0 %v61, 113
  %v343 = vpop.permute.xlu0 %342
  %344 = vrot.lane.b32.xlu0 %v58, 113
  %v345 = vpop.permute.xlu0 %344
  %346 = vrot.lane.b32.xlu0 %v62, 113
  %v347 = vpop.permute.xlu0 %346
  %348 = vrot.lane.b32.xlu0 %v59, 113
  %v349 = vpop.permute.xlu0 %348
  %350 = vrot.lane.b32.xlu0 %v63, 113
  %v351 = vpop.permute.xlu0 %350
  %vm352 = vcmp.lt.s32.totalorder %v81, 113
  %v353 = vsel %vm352, %v345, %v349
  %v354 = vsel %vm352, %v347, %v351
  %v355 = vsel %vm352, %v341, %v345
  %v356 = vsel %vm352, %v343, %v347
  %v357 = vsel %vm352, %v337, %v341
  %v358 = vsel %vm352, %v339, %v343
  %v359 = vsel %vm352, %v349, %v337
  %v360 = vsel %vm352, %v351, %v339
  %v362 = vlaneseq
  %v363 = vshrl.u32 %v362, 7
  %v364 = vsub.s32 0, %v363
  %v365 = vrot.slane %v39, %v364
  %v366 = vlaneseq
  %v367 = vshrl.u32 %v366, 7
  %v368 = vsub.s32 1, %v367
  %v369 = vrot.slane %v39, %v368
  %v370 = vlaneseq
  %v371 = vshrl.u32 %v370, 7
  %v372 = vsub.s32 2, %v371
  %v373 = vrot.slane %v39, %v372
  %v374 = vlaneseq
  %v375 = vshrl.u32 %v374, 7
  %v376 = vsub.s32 3, %v375
  %v377 = vrot.slane %v39, %v376
  %v382 = vmul.f32 %v357, %v365
  %v383 = vmul.f32 %v355, %v369
  %v384 = vmul.f32 %v353, %v373
  %v385 = vmul.f32 %v359, %v377
  %v386 = vmul.f32 %v358, %v365
  %v387 = vmul.f32 %v356, %v369
  %v388 = vmul.f32 %v354, %v373
  %v389 = vmul.f32 %v360, %v377
  %390 = vrot.lane.b32.xlu0 %v56, 112
  %v391 = vpop.permute.xlu0 %390
  %392 = vrot.lane.b32.xlu0 %v60, 112
  %v393 = vpop.permute.xlu0 %392
  %394 = vrot.lane.b32.xlu0 %v57, 112
  %v395 = vpop.permute.xlu0 %394
  %396 = vrot.lane.b32.xlu0 %v61, 112
  %v397 = vpop.permute.xlu0 %396
  %398 = vrot.lane.b32.xlu0 %v58, 112
  %v399 = vpop.permute.xlu0 %398
  %400 = vrot.lane.b32.xlu0 %v62, 112
  %v401 = vpop.permute.xlu0 %400
  %402 = vrot.lane.b32.xlu0 %v59, 112
  %v403 = vpop.permute.xlu0 %402
  %404 = vrot.lane.b32.xlu0 %v63, 112
  %v405 = vpop.permute.xlu0 %404
  %vm406 = vcmp.lt.s32.totalorder %v81, 112
  %v407 = vsel %vm406, %v399, %v403
  %v408 = vsel %vm406, %v401, %v405
  %v409 = vsel %vm406, %v395, %v399
  %v410 = vsel %vm406, %v397, %v401
  %v411 = vsel %vm406, %v391, %v395
  %v412 = vsel %vm406, %v393, %v397
  %v413 = vsel %vm406, %v403, %v391
  %v414 = vsel %vm406, %v405, %v393
  %v416 = vlaneseq
  %v417 = vshrl.u32 %v416, 7
  %v418 = vsub.s32 0, %v417
  %v419 = vrot.slane %v41, %v418
  %v420 = vlaneseq
  %v421 = vshrl.u32 %v420, 7
  %v422 = vsub.s32 1, %v421
  %v423 = vrot.slane %v41, %v422
  %v424 = vlaneseq
  %v425 = vshrl.u32 %v424, 7
  %v426 = vsub.s32 2, %v425
  %v427 = vrot.slane %v41, %v426
  %v428 = vlaneseq
  %v429 = vshrl.u32 %v428, 7
  %v430 = vsub.s32 3, %v429
  %v431 = vrot.slane %v41, %v430
  %v436 = vmul.f32 %v411, %v419
  %v437 = vmul.f32 %v409, %v423
  %v438 = vmul.f32 %v407, %v427
  %v439 = vmul.f32 %v413, %v431
  %v440 = vmul.f32 %v412, %v419
  %v441 = vmul.f32 %v410, %v423
  %v442 = vmul.f32 %v408, %v427
  %v443 = vmul.f32 %v414, %v431
  %444 = vrot.lane.b32.xlu0 %v56, 111
  %v445 = vpop.permute.xlu0 %444
  %446 = vrot.lane.b32.xlu0 %v60, 111
  %v447 = vpop.permute.xlu0 %446
  %448 = vrot.lane.b32.xlu0 %v57, 111
  %v449 = vpop.permute.xlu0 %448
  %450 = vrot.lane.b32.xlu0 %v61, 111
  %v451 = vpop.permute.xlu0 %450
  %452 = vrot.lane.b32.xlu0 %v58, 111
  %v453 = vpop.permute.xlu0 %452
  %454 = vrot.lane.b32.xlu0 %v62, 111
  %v455 = vpop.permute.xlu0 %454
  %456 = vrot.lane.b32.xlu0 %v59, 111
  %v457 = vpop.permute.xlu0 %456
  %458 = vrot.lane.b32.xlu0 %v63, 111
  %v459 = vpop.permute.xlu0 %458
  %vm460 = vcmp.lt.s32.totalorder %v81, 111
  %v461 = vsel %vm460, %v453, %v457
  %v462 = vsel %vm460, %v455, %v459
  %v463 = vsel %vm460, %v449, %v453
  %v464 = vsel %vm460, %v451, %v455
  %v465 = vsel %vm460, %v445, %v449
  %v466 = vsel %vm460, %v447, %v451
  %v467 = vsel %vm460, %v457, %v445
  %v468 = vsel %vm460, %v459, %v447
  %v470 = vlaneseq
  %v471 = vshrl.u32 %v470, 7
  %v472 = vsub.s32 0, %v471
  %v473 = vrot.slane %v43, %v472
  %v474 = vlaneseq
  %v475 = vshrl.u32 %v474, 7
  %v476 = vsub.s32 1, %v475
  %v477 = vrot.slane %v43, %v476
  %v478 = vlaneseq
  %v479 = vshrl.u32 %v478, 7
  %v480 = vsub.s32 2, %v479
  %v481 = vrot.slane %v43, %v480
  %v482 = vlaneseq
  %v483 = vshrl.u32 %v482, 7
  %v484 = vsub.s32 3, %v483
  %v485 = vrot.slane %v43, %v484
  %v490 = vmul.f32 %v465, %v473
  %v491 = vmul.f32 %v463, %v477
  %v492 = vmul.f32 %v461, %v481
  %v493 = vmul.f32 %v467, %v485
  %v494 = vmul.f32 %v466, %v473
  %v495 = vmul.f32 %v464, %v477
  %v496 = vmul.f32 %v462, %v481
  %v497 = vmul.f32 %v468, %v485
  %499 = vset.pattern.permute.xlu0 0
  %500 = vperm.xlu0 %499, %v51
  %v501 = vpop.permute.xlu0 %500
  %504 = vset.pattern.permute.xlu0 0
  %505 = vperm.xlu0 %504, %v52
  %v506 = vpop.permute.xlu0 %505
  %vm508 = vcmask 130048
  %v510 = vsel %vm508, %v45, 0
  %v513 = vsel %vm508, %v47, 0
  %515 = vmatprep.subr.mxu0 %v113
  %516 = vmatpush1.msra.mxu0 %v112
  %517 = vmatprep.subr.mxu0 %v117
  %518 = vmatpush1.msra.mxu0 %v116
  %519 = vmatprep.subr.mxu0 %v167
  %520 = vmatpush1.msra.mxu0 %v166
  %521 = vmatprep.subr.mxu0 %v171
  %522 = vmatpush1.msra.mxu0 %v170
  %523 = vmatprep.subr.mxu0 %v221
  %524 = vmatpush1.msra.mxu0 %v220
  %525 = vmatprep.subr.mxu0 %v225
  %526 = vmatpush1.msra.mxu0 %v224
  %527 = vmatprep.subr.mxu0 %v275
  %528 = vmatpush1.msra.mxu0 %v274
  %529 = vmatprep.subr.mxu0 %v279
  %530 = vmatpush1.msra.mxu0 %v278
  %531 = vmatprep.subr.mxu0 %v57
  %532 = vmatpush1.msra.mxu0 %v56
  %533 = vmatprep.subr.mxu0 %v61
  %534 = vmatpush1.msra.mxu0 %v60
  %535 = vmatprep.subr.mxu0 %v329
  %536 = vmatpush1.msra.mxu0 %v328
  %537 = vmatprep.subr.mxu0 %v333
  %538 = vmatpush1.msra.mxu0 %v332
  %539 = vmatprep.subr.mxu0 %v383
  %540 = vmatpush1.msra.mxu0 %v382
  %541 = vmatprep.subr.mxu0 %v387
  %542 = vmatpush1.msra.mxu0 %v386
  %543 = vmatprep.subr.mxu0 %v437
  %544 = vmatpush1.msra.mxu0 %v436
  %545 = vmatprep.subr.mxu0 %v441
  %546 = vmatpush1.msra.mxu0 %v440
  %547 = vmatprep.subr.mxu0 %v491
  %548 = vmatpush1.msra.mxu0 %v490
  %549 = vmatprep.subr.mxu0 %v495
  %550 = vmatpush1.msra.mxu0 %v494
  %551 = vmatprep.subr.mxu0 0.0
  %552 = vmatpush1.msra.mxu0 0.0
  %553 = vmatprep.subr.mxu0 0.0
  %554 = vmatpush1.msra.mxu0 0.0
  %555 = vmatprep.subr.mxu0 0.0
  %556 = vmatpush1.msra.mxu0 0.0
  %557 = vmatprep.subr.mxu0 0.0
  %558 = vmatpush1.msra.mxu0 0.0
  %559 = vmatprep.subr.mxu0 0.0
  %560 = vmatpush1.msra.mxu0 0.0
  %561 = vmatprep.subr.mxu0 0.0
  %562 = vmatpush1.msra.mxu0 0.0
  %563 = vmatprep.subr.mxu0 0.0
  %564 = vmatpush1.msra.mxu0 0.0
  %565 = vmatprep.subr.mxu0 0.0
  %566 = vmatpush1.msra.mxu0 0.0
  %567 = vmatprep.subr.mxu0 0.0
  %568 = vmatpush1.msra.mxu0 0.0
  %569 = vmatprep.subr.mxu0 0.0
  %570 = vmatpush1.msra.mxu0 0.0
  %571 = vmatprep.subr.mxu0 0.0
  %572 = vmatpush1.msra.mxu0 0.0
  %573 = vmatprep.subr.mxu0 0.0
  %574 = vmatpush1.msra.mxu0 0.0
  %575 = vmatprep.subr.mxu0 0.0
  %576 = vmatpush1.msra.mxu0 0.0
  %577 = vmatprep.subr.mxu0 0.0
  %578 = vmatpush1.msra.mxu0 0.0
  %579 = vmatprep.mubr.f32.mxu0 %v510
  %580 = vmatmul.mubr.f32.gmra.mrb[0].mxu0 %v44
  %v581 = vpop.f32.mrb[0].mxu0
  %v582 = vadd.f32 %v501, %v581
  %v583 = vpop.f32.mrb[0].mxu0
  %v584 = vadd.f32 %v501, %v583
  %585 = vmatprep.mubr.f32.mxu0 %v513
  %586 = vmatmul.mubr.f32.gmra.mrb[0].mxu0 %v46
  %v587 = vpop.f32.mrb[0].mxu0
  %v588 = vadd.f32 %v506, %v587
  %v589 = vpop.f32.mrb[0].mxu0
  %v590 = vadd.f32 %v506, %v589
  %591 = vdwg.mxu0
  %592 = vmatprep.subr.mxu0 %v115
  %593 = vmatpush1.msra.mxu0 %v114
  %594 = vmatprep.subr.mxu0 %v119
  %595 = vmatpush1.msra.mxu0 %v118
  %596 = vmatprep.subr.mxu0 %v169
  %597 = vmatpush1.msra.mxu0 %v168
  %598 = vmatprep.subr.mxu0 %v173
  %599 = vmatpush1.msra.mxu0 %v172
  %600 = vmatprep.subr.mxu0 %v223
  %601 = vmatpush1.msra.mxu0 %v222
  %602 = vmatprep.subr.mxu0 %v227
  %603 = vmatpush1.msra.mxu0 %v226
  %604 = vmatprep.subr.mxu0 %v277
  %605 = vmatpush1.msra.mxu0 %v276
  %606 = vmatprep.subr.mxu0 %v281
  %607 = vmatpush1.msra.mxu0 %v280
  %608 = vmatprep.subr.mxu0 %v59
  %609 = vmatpush1.msra.mxu0 %v58
  %610 = vmatprep.subr.mxu0 %v63
  %611 = vmatpush1.msra.mxu0 %v62
  %612 = vmatprep.subr.mxu0 %v331
  %613 = vmatpush1.msra.mxu0 %v330
  %614 = vmatprep.subr.mxu0 %v335
  %615 = vmatpush1.msra.mxu0 %v334
  %616 = vmatprep.subr.mxu0 %v385
  %617 = vmatpush1.msra.mxu0 %v384
  %618 = vmatprep.subr.mxu0 %v389
  %619 = vmatpush1.msra.mxu0 %v388
  %620 = vmatprep.subr.mxu0 %v439
  %621 = vmatpush1.msra.mxu0 %v438
  %622 = vmatprep.subr.mxu0 %v443
  %623 = vmatpush1.msra.mxu0 %v442
  %624 = vmatprep.subr.mxu0 %v493
  %625 = vmatpush1.msra.mxu0 %v492
  %626 = vmatprep.subr.mxu0 %v497
  %627 = vmatpush1.msra.mxu0 %v496
  %628 = vmatprep.subr.mxu0 0.0
  %629 = vmatpush1.msra.mxu0 0.0
  %630 = vmatprep.subr.mxu0 0.0
  %631 = vmatpush1.msra.mxu0 0.0
  %632 = vmatprep.subr.mxu0 0.0
  %633 = vmatpush1.msra.mxu0 0.0
  %634 = vmatprep.subr.mxu0 0.0
  %635 = vmatpush1.msra.mxu0 0.0
  %636 = vmatprep.subr.mxu0 0.0
  %637 = vmatpush1.msra.mxu0 0.0
  %638 = vmatprep.subr.mxu0 0.0
  %639 = vmatpush1.msra.mxu0 0.0
  %640 = vmatprep.subr.mxu0 0.0
  %641 = vmatpush1.msra.mxu0 0.0
  %642 = vmatprep.subr.mxu0 0.0
  %643 = vmatpush1.msra.mxu0 0.0
  %644 = vmatprep.subr.mxu0 0.0
  %645 = vmatpush1.msra.mxu0 0.0
  %646 = vmatprep.subr.mxu0 0.0
  %647 = vmatpush1.msra.mxu0 0.0
  %648 = vmatprep.subr.mxu0 0.0
  %649 = vmatpush1.msra.mxu0 0.0
  %650 = vmatprep.subr.mxu0 0.0
  %651 = vmatpush1.msra.mxu0 0.0
  %652 = vmatprep.subr.mxu0 0.0
  %653 = vmatpush1.msra.mxu0 0.0
  %654 = vmatprep.subr.mxu0 0.0
  %655 = vmatpush1.msra.mxu0 0.0
  %656 = vmatprep.mubr.f32.mxu0 %v510
  %657 = vmatmul.mubr.f32.gmra.mrb[0].mxu0 %v44
  %v658 = vpop.f32.mrb[0].mxu0
  %v659 = vadd.f32 %v501, %v658
  %v660 = vpop.f32.mrb[0].mxu0
  %v661 = vadd.f32 %v501, %v660
  %662 = vmatprep.mubr.f32.mxu0 %v513
  %663 = vmatmul.mubr.f32.gmra.mrb[0].mxu0 %v46
  %v664 = vpop.f32.mrb[0].mxu0
  %v665 = vadd.f32 %v506, %v664
  %v666 = vpop.f32.mrb[0].mxu0
  %v667 = vadd.f32 %v506, %v666
  %668 = vdwg.mxu0
  %670 = vset.pattern.permute.xlu0 0
  %671 = vperm.xlu0 %670, %v53
  %v672 = vpop.permute.xlu0 %671
  %v675 = vsel %vm508, %v48, 0
  %677 = vmatprep.subr.mxu0 %v584
  %678 = vmatpush1.msra.mxu0 %v582
  %679 = vmatprep.subr.mxu0 %v590
  %680 = vmatpush1.msra.mxu0 %v588
  %681 = vmatprep.subr.mxu0 0.0
  %682 = vmatpush1.msra.mxu0 0.0
  %683 = vmatprep.subr.mxu0 0.0
  %684 = vmatpush1.msra.mxu0 0.0
  %685 = vmatprep.subr.mxu0 0.0
  %686 = vmatpush1.msra.mxu0 0.0
  %687 = vmatprep.subr.mxu0 0.0
  %688 = vmatpush1.msra.mxu0 0.0
  %689 = vmatprep.subr.mxu0 0.0
  %690 = vmatpush1.msra.mxu0 0.0
  %691 = vmatprep.subr.mxu0 0.0
  %692 = vmatpush1.msra.mxu0 0.0
  %693 = vmatprep.subr.mxu0 0.0
  %694 = vmatpush1.msra.mxu0 0.0
  %695 = vmatprep.subr.mxu0 0.0
  %696 = vmatpush1.msra.mxu0 0.0
  %697 = vmatprep.subr.mxu0 0.0
  %698 = vmatpush1.msra.mxu0 0.0
  %699 = vmatprep.subr.mxu0 0.0
  %700 = vmatpush1.msra.mxu0 0.0
  %701 = vmatprep.subr.mxu0 0.0
  %702 = vmatpush1.msra.mxu0 0.0
  %703 = vmatprep.subr.mxu0 0.0
  %704 = vmatpush1.msra.mxu0 0.0
  %705 = vmatprep.subr.mxu0 0.0
  %706 = vmatpush1.msra.mxu0 0.0
  %707 = vmatprep.subr.mxu0 0.0
  %708 = vmatpush1.msra.mxu0 0.0
  %709 = vmatprep.subr.mxu0 0.0
  %710 = vmatpush1.msra.mxu0 0.0
  %711 = vmatprep.subr.mxu0 0.0
  %712 = vmatpush1.msra.mxu0 0.0
  %713 = vmatprep.subr.mxu0 0.0
  %714 = vmatpush1.msra.mxu0 0.0
  %715 = vmatprep.subr.mxu0 0.0
  %716 = vmatpush1.msra.mxu0 0.0
  %717 = vmatprep.subr.mxu0 0.0
  %718 = vmatpush1.msra.mxu0 0.0
  %719 = vmatprep.subr.mxu0 0.0
  %720 = vmatpush1.msra.mxu0 0.0
  %721 = vmatprep.subr.mxu0 0.0
  %722 = vmatpush1.msra.mxu0 0.0
  %723 = vmatprep.subr.mxu0 0.0
  %724 = vmatpush1.msra.mxu0 0.0
  %725 = vmatprep.subr.mxu0 0.0
  %726 = vmatpush1.msra.mxu0 0.0
  %727 = vmatprep.subr.mxu0 0.0
  %728 = vmatpush1.msra.mxu0 0.0
  %729 = vmatprep.subr.mxu0 0.0
  %730 = vmatpush1.msra.mxu0 0.0
  %731 = vmatprep.subr.mxu0 0.0
  %732 = vmatpush1.msra.mxu0 0.0
  %733 = vmatprep.subr.mxu0 0.0
  %734 = vmatpush1.msra.mxu0 0.0
  %735 = vmatprep.subr.mxu0 0.0
  %736 = vmatpush1.msra.mxu0 0.0
  %737 = vmatprep.subr.mxu0 0.0
  %738 = vmatpush1.msra.mxu0 0.0
  %739 = vmatprep.subr.mxu0 0.0
  %740 = vmatpush1.msra.mxu0 0.0
  %741 = vmatprep.mubr.f32.mxu0 0.0
  %742 = vmatmul.mubr.f32.gmra.mrb[0].mxu0 %v675
  %v743 = vpop.f32.mrb[0].mxu0
  %v744 = vadd.f32 %v672, %v743
  %v745 = vpop.f32.mrb[0].mxu0
  %v746 = vadd.f32 %v672, %v745
  %747 = vdwg.mxu0
  %748 = vmatprep.subr.mxu0 %v661
  %749 = vmatpush1.msra.mxu0 %v659
  %750 = vmatprep.subr.mxu0 %v667
  %751 = vmatpush1.msra.mxu0 %v665
  %752 = vmatprep.subr.mxu0 0.0
  %753 = vmatpush1.msra.mxu0 0.0
  %754 = vmatprep.subr.mxu0 0.0
  %755 = vmatpush1.msra.mxu0 0.0
  %756 = vmatprep.subr.mxu0 0.0
  %757 = vmatpush1.msra.mxu0 0.0
  %758 = vmatprep.subr.mxu0 0.0
  %759 = vmatpush1.msra.mxu0 0.0
  %760 = vmatprep.subr.mxu0 0.0
  %761 = vmatpush1.msra.mxu0 0.0
  %762 = vmatprep.subr.mxu0 0.0
  %763 = vmatpush1.msra.mxu0 0.0
  %764 = vmatprep.subr.mxu0 0.0
  %765 = vmatpush1.msra.mxu0 0.0
  %766 = vmatprep.subr.mxu0 0.0
  %767 = vmatpush1.msra.mxu0 0.0
  %768 = vmatprep.subr.mxu0 0.0
  %769 = vmatpush1.msra.mxu0 0.0
  %770 = vmatprep.subr.mxu0 0.0
  %771 = vmatpush1.msra.mxu0 0.0
  %772 = vmatprep.subr.mxu0 0.0
  %773 = vmatpush1.msra.mxu0 0.0
  %774 = vmatprep.subr.mxu0 0.0
  %775 = vmatpush1.msra.mxu0 0.0
  %776 = vmatprep.subr.mxu0 0.0
  %777 = vmatpush1.msra.mxu0 0.0
  %778 = vmatprep.subr.mxu0 0.0
  %779 = vmatpush1.msra.mxu0 0.0
  %780 = vmatprep.subr.mxu0 0.0
  %781 = vmatpush1.msra.mxu0 0.0
  %782 = vmatprep.subr.mxu0 0.0
  %783 = vmatpush1.msra.mxu0 0.0
  %784 = vmatprep.subr.mxu0 0.0
  %785 = vmatpush1.msra.mxu0 0.0
  %786 = vmatprep.subr.mxu0 0.0
  %787 = vmatpush1.msra.mxu0 0.0
  %788 = vmatprep.subr.mxu0 0.0
  %789 = vmatpush1.msra.mxu0 0.0
  %790 = vmatprep.subr.mxu0 0.0
  %791 = vmatpush1.msra.mxu0 0.0
  %792 = vmatprep.subr.mxu0 0.0
  %793 = vmatpush1.msra.mxu0 0.0
  %794 = vmatprep.subr.mxu0 0.0
  %795 = vmatpush1.msra.mxu0 0.0
  %796 = vmatprep.subr.mxu0 0.0
  %797 = vmatpush1.msra.mxu0 0.0
  %798 = vmatprep.subr.mxu0 0.0
  %799 = vmatpush1.msra.mxu0 0.0
  %800 = vmatprep.subr.mxu0 0.0
  %801 = vmatpush1.msra.mxu0 0.0
  %802 = vmatprep.subr.mxu0 0.0
  %803 = vmatpush1.msra.mxu0 0.0
  %804 = vmatprep.subr.mxu0 0.0
  %805 = vmatpush1.msra.mxu0 0.0
  %806 = vmatprep.subr.mxu0 0.0
  %807 = vmatpush1.msra.mxu0 0.0
  %808 = vmatprep.subr.mxu0 0.0
  %809 = vmatpush1.msra.mxu0 0.0
  %810 = vmatprep.subr.mxu0 0.0
  %811 = vmatpush1.msra.mxu0 0.0
  %812 = vmatprep.mubr.f32.mxu0 0.0
  %813 = vmatmul.mubr.f32.gmra.mrb[0].mxu0 %v675
  %v814 = vpop.f32.mrb[0].mxu0
  %v815 = vadd.f32 %v672, %v814
  %v816 = vpop.f32.mrb[0].mxu0
  %v817 = vadd.f32 %v672, %v816
  %818 = vdwg.mxu0
  %v819 = vmax.f32 %v744, 0.0
  %v820 = vmax.f32 %v746, 0.0
  %v821 = vmax.f32 %v815, 0.0
  %v822 = vmax.f32 %v817, 0.0
  %823 = vrot.lane.b32.xlu0 %v819, 17
  %v824 = vpop.permute.xlu0 %823
  %825 = vrot.lane.b32.xlu0 %v820, 17
  %v826 = vpop.permute.xlu0 %825
  %827 = vrot.lane.b32.xlu0 %v821, 17
  %v828 = vpop.permute.xlu0 %827
  %829 = vrot.lane.b32.xlu0 %v822, 17
  %v830 = vpop.permute.xlu0 %829
  %v831 = vsel %vm82, %v828, %v830
  %v832 = vsel %vm82, %v826, %v828
  %v833 = vsel %vm82, %v824, %v826
  %v834 = vsel %vm82, %v830, %v824
  %v835 = vmul.f32 %v834, %v95
  %v836 = vmul.f32 %v833, %v99
  %v837 = vmul.f32 %v832, %v103
  %v838 = vmul.f32 %v831, %v107
  %839 = vrot.lane.b32.xlu0 %v819, 16
  %v840 = vpop.permute.xlu0 %839
  %841 = vrot.lane.b32.xlu0 %v820, 16
  %v842 = vpop.permute.xlu0 %841
  %843 = vrot.lane.b32.xlu0 %v821, 16
  %v844 = vpop.permute.xlu0 %843
  %845 = vrot.lane.b32.xlu0 %v822, 16
  %v846 = vpop.permute.xlu0 %845
  %v847 = vsel %vm136, %v844, %v846
  %v848 = vsel %vm136, %v842, %v844
  %v849 = vsel %vm136, %v840, %v842
  %v850 = vsel %vm136, %v846, %v840
  %v851 = vmul.f32 %v850, %v149
  %v852 = vmul.f32 %v849, %v153
  %v853 = vmul.f32 %v848, %v157
  %v854 = vmul.f32 %v847, %v161
  %855 = vrot.lane.b32.xlu0 %v819, 15
  %v856 = vpop.permute.xlu0 %855
  %857 = vrot.lane.b32.xlu0 %v820, 15
  %v858 = vpop.permute.xlu0 %857
  %859 = vrot.lane.b32.xlu0 %v821, 15
  %v860 = vpop.permute.xlu0 %859
  %861 = vrot.lane.b32.xlu0 %v822, 15
  %v862 = vpop.permute.xlu0 %861
  %v863 = vsel %vm190, %v860, %v862
  %v864 = vsel %vm190, %v858, %v860
  %v865 = vsel %vm190, %v856, %v858
  %v866 = vsel %vm190, %v862, %v856
  %v867 = vmul.f32 %v866, %v203
  %v868 = vmul.f32 %v865, %v207
  %v869 = vmul.f32 %v864, %v211
  %v870 = vmul.f32 %v863, %v215
  %871 = vrot.lane.b32.xlu0 %v819, 1
  %v872 = vpop.permute.xlu0 %871
  %873 = vrot.lane.b32.xlu0 %v820, 1
  %v874 = vpop.permute.xlu0 %873
  %875 = vrot.lane.b32.xlu0 %v821, 1
  %v876 = vpop.permute.xlu0 %875
  %877 = vrot.lane.b32.xlu0 %v822, 1
  %v878 = vpop.permute.xlu0 %877
  %v879 = vsel %vm244, %v876, %v878
  %v880 = vsel %vm244, %v874, %v876
  %v881 = vsel %vm244, %v872, %v874
  %v882 = vsel %vm244, %v878, %v872
  %v883 = vmul.f32 %v882, %v257
  %v884 = vmul.f32 %v881, %v261
  %v885 = vmul.f32 %v880, %v265
  %v886 = vmul.f32 %v879, %v269
  %887 = vrot.lane.b32.xlu0 %v819, 127
  %v888 = vpop.permute.xlu0 %887
  %889 = vrot.lane.b32.xlu0 %v820, 127
  %v890 = vpop.permute.xlu0 %889
  %891 = vrot.lane.b32.xlu0 %v821, 127
  %v892 = vpop.permute.xlu0 %891
  %893 = vrot.lane.b32.xlu0 %v822, 127
  %v894 = vpop.permute.xlu0 %893
  %v895 = vsel %vm298, %v892, %v894
  %v896 = vsel %vm298, %v890, %v892
  %v897 = vsel %vm298, %v888, %v890
  %v898 = vsel %vm298, %v894, %v888
  %v899 = vmul.f32 %v897, %v311
  %v900 = vmul.f32 %v896, %v315
  %v901 = vmul.f32 %v895, %v319
  %v902 = vmul.f32 %v898, %v323
  %903 = vrot.lane.b32.xlu0 %v819, 113
  %v904 = vpop.permute.xlu0 %903
  %905 = vrot.lane.b32.xlu0 %v820, 113
  %v906 = vpop.permute.xlu0 %905
  %907 = vrot.lane.b32.xlu0 %v821, 113
  %v908 = vpop.permute.xlu0 %907
  %909 = vrot.lane.b32.xlu0 %v822, 113
  %v910 = vpop.permute.xlu0 %909
  %v911 = vsel %vm352, %v908, %v910
  %v912 = vsel %vm352, %v906, %v908
  %v913 = vsel %vm352, %v904, %v906
  %v914 = vsel %vm352, %v910, %v904
  %v915 = vmul.f32 %v913, %v365
  %v916 = vmul.f32 %v912, %v369
  %v917 = vmul.f32 %v911, %v373
  %v918 = vmul.f32 %v914, %v377
  %919 = vrot.lane.b32.xlu0 %v819, 112
  %v920 = vpop.permute.xlu0 %919
  %921 = vrot.lane.b32.xlu0 %v820, 112
  %v922 = vpop.permute.xlu0 %921
  %923 = vrot.lane.b32.xlu0 %v821, 112
  %v924 = vpop.permute.xlu0 %923
  %925 = vrot.lane.b32.xlu0 %v822, 112
  %v926 = vpop.permute.xlu0 %925
  %v927 = vsel %vm406, %v924, %v926
  %v928 = vsel %vm406, %v922, %v924
  %v929 = vsel %vm406, %v920, %v922
  %v930 = vsel %vm406, %v926, %v920
  %v931 = vmul.f32 %v929, %v419
  %v932 = vmul.f32 %v928, %v423
  %v933 = vmul.f32 %v927, %v427
  %v934 = vmul.f32 %v930, %v431
  %935 = vrot.lane.b32.xlu0 %v819, 111
  %v936 = vpop.permute.xlu0 %935
  %937 = vrot.lane.b32.xlu0 %v820, 111
  %v938 = vpop.permute.xlu0 %937
  %939 = vrot.lane.b32.xlu0 %v821, 111
  %v940 = vpop.permute.xlu0 %939
  %941 = vrot.lane.b32.xlu0 %v822, 111
  %v942 = vpop.permute.xlu0 %941
  %v943 = vsel %vm460, %v940, %v942
  %v944 = vsel %vm460, %v938, %v940
  %v945 = vsel %vm460, %v936, %v938
  %v946 = vsel %vm460, %v942, %v936
  %v947 = vmul.f32 %v945, %v473
  %v948 = vmul.f32 %v944, %v477
  %v949 = vmul.f32 %v943, %v481
  %v950 = vmul.f32 %v946, %v485
  %952 = vset.pattern.permute.xlu0 0
  %953 = vperm.xlu0 %952, %v54
  %v954 = vpop.permute.xlu0 %953
  %957 = vset.pattern.permute.xlu0 0
  %958 = vperm.xlu0 %957, %v55
  %v959 = vpop.permute.xlu0 %958
  %vm961 = vcmask 588800
  %v963 = vsel %vm961, %v49, 0
  %v966 = vsel %vm961, %v50, 0
  %968 = vmatprep.subr.mxu0 %v836
  %969 = vmatpush1.msra.mxu0 %v835
  %970 = vmatprep.subr.mxu0 %v852
  %971 = vmatpush1.msra.mxu0 %v851
  %972 = vmatprep.subr.mxu0 %v868
  %973 = vmatpush1.msra.mxu0 %v867
  %974 = vmatprep.subr.mxu0 %v884
  %975 = vmatpush1.msra.mxu0 %v883
  %976 = vmatprep.subr.mxu0 %v820
  %977 = vmatpush1.msra.mxu0 %v819
  %978 = vmatprep.subr.mxu0 %v900
  %979 = vmatpush1.msra.mxu0 %v899
  %980 = vmatprep.subr.mxu0 %v916
  %981 = vmatpush1.msra.mxu0 %v915
  %982 = vmatprep.subr.mxu0 %v932
  %983 = vmatpush1.msra.mxu0 %v931
  %984 = vmatprep.subr.mxu0 %v948
  %985 = vmatpush1.msra.mxu0 %v947
  %986 = vmatprep.subr.mxu0 0.0
  %987 = vmatpush1.msra.mxu0 0.0
  %988 = vmatprep.subr.mxu0 0.0
  %989 = vmatpush1.msra.mxu0 0.0
  %990 = vmatprep.subr.mxu0 0.0
  %991 = vmatpush1.msra.mxu0 0.0
  %992 = vmatprep.subr.mxu0 0.0
  %993 = vmatpush1.msra.mxu0 0.0
  %994 = vmatprep.subr.mxu0 0.0
  %995 = vmatpush1.msra.mxu0 0.0
  %996 = vmatprep.subr.mxu0 0.0
  %997 = vmatpush1.msra.mxu0 0.0
  %998 = vmatprep.subr.mxu0 0.0
  %999 = vmatpush1.msra.mxu0 0.0
  %1000 = vmatprep.subr.mxu0 0.0
  %1001 = vmatpush1.msra.mxu0 0.0
  %1002 = vmatprep.subr.mxu0 0.0
  %1003 = vmatpush1.msra.mxu0 0.0
  %1004 = vmatprep.subr.mxu0 0.0
  %1005 = vmatpush1.msra.mxu0 0.0
  %1006 = vmatprep.subr.mxu0 0.0
  %1007 = vmatpush1.msra.mxu0 0.0
  %1008 = vmatprep.subr.mxu0 0.0
  %1009 = vmatpush1.msra.mxu0 0.0
  %1010 = vmatprep.subr.mxu0 0.0
  %1011 = vmatpush1.msra.mxu0 0.0
  %1012 = vmatprep.subr.mxu0 0.0
  %1013 = vmatpush1.msra.mxu0 0.0
  %1014 = vmatprep.subr.mxu0 0.0
  %1015 = vmatpush1.msra.mxu0 0.0
  %1016 = vmatprep.subr.mxu0 0.0
  %1017 = vmatpush1.msra.mxu0 0.0
  %1018 = vmatprep.subr.mxu0 0.0
  %1019 = vmatpush1.msra.mxu0 0.0
  %1020 = vmatprep.subr.mxu0 0.0
  %1021 = vmatpush1.msra.mxu0 0.0
  %1022 = vmatprep.subr.mxu0 0.0
  %1023 = vmatpush1.msra.mxu0 0.0
  %1024 = vmatprep.subr.mxu0 0.0
  %1025 = vmatpush1.msra.mxu0 0.0
  %1026 = vmatprep.subr.mxu0 0.0
  %1027 = vmatpush1.msra.mxu0 0.0
  %1028 = vmatprep.subr.mxu0 0.0
  %1029 = vmatpush1.msra.mxu0 0.0
  %1030 = vmatprep.subr.mxu0 0.0
  %1031 = vmatpush1.msra.mxu0 0.0
  %1032 = vmatprep.mubr.f32.mxu0 0.0
  %1033 = vmatmul.mubr.f32.gmra.mrb[0].mxu0 %v963
  %v1034 = vpop.f32.mrb[0].mxu0
  %v1035 = vadd.f32 %v954, %v1034
  %v1036 = vpop.f32.mrb[0].mxu0
  %v1037 = vadd.f32 %v954, %v1036
  %1038 = vmatprep.mubr.f32.mxu0 0.0
  %1039 = vmatmul.mubr.f32.gmra.mrb[0].mxu0 %v966
  %v1040 = vpop.f32.mrb[0].mxu0
  %v1041 = vadd.f32 %v959, %v1040
  %v1042 = vpop.f32.mrb[0].mxu0
  %v1043 = vadd.f32 %v959, %v1042
  %1044 = vdwg.mxu0
  %1045 = vmatprep.subr.mxu0 %v838
  %1046 = vmatpush1.msra.mxu0 %v837
  %1047 = vmatprep.subr.mxu0 %v854
  %1048 = vmatpush1.msra.mxu0 %v853
  %1049 = vmatprep.subr.mxu0 %v870
  %1050 = vmatpush1.msra.mxu0 %v869
  %1051 = vmatprep.subr.mxu0 %v886
  %1052 = vmatpush1.msra.mxu0 %v885
  %1053 = vmatprep.subr.mxu0 %v822
  %1054 = vmatpush1.msra.mxu0 %v821
  %1055 = vmatprep.subr.mxu0 %v902
  %1056 = vmatpush1.msra.mxu0 %v901
  %1057 = vmatprep.subr.mxu0 %v918
  %1058 = vmatpush1.msra.mxu0 %v917
  %1059 = vmatprep.subr.mxu0 %v934
  %1060 = vmatpush1.msra.mxu0 %v933
  %1061 = vmatprep.subr.mxu0 %v950
  %1062 = vmatpush1.msra.mxu0 %v949
  %1063 = vmatprep.subr.mxu0 0.0
  %1064 = vmatpush1.msra.mxu0 0.0
  %1065 = vmatprep.subr.mxu0 0.0
  %1066 = vmatpush1.msra.mxu0 0.0
  %1067 = vmatprep.subr.mxu0 0.0
  %1068 = vmatpush1.msra.mxu0 0.0
  %1069 = vmatprep.subr.mxu0 0.0
  %1070 = vmatpush1.msra.mxu0 0.0
  %1071 = vmatprep.subr.mxu0 0.0
  %1072 = vmatpush1.msra.mxu0 0.0
  %1073 = vmatprep.subr.mxu0 0.0
  %1074 = vmatpush1.msra.mxu0 0.0
  %1075 = vmatprep.subr.mxu0 0.0
  %1076 = vmatpush1.msra.mxu0 0.0
  %1077 = vmatprep.subr.mxu0 0.0
  %1078 = vmatpush1.msra.mxu0 0.0
  %1079 = vmatprep.subr.mxu0 0.0
  %1080 = vmatpush1.msra.mxu0 0.0
  %1081 = vmatprep.subr.mxu0 0.0
  %1082 = vmatpush1.msra.mxu0 0.0
  %1083 = vmatprep.subr.mxu0 0.0
  %1084 = vmatpush1.msra.mxu0 0.0
  %1085 = vmatprep.subr.mxu0 0.0
  %1086 = vmatpush1.msra.mxu0 0.0
  %1087 = vmatprep.subr.mxu0 0.0
  %1088 = vmatpush1.msra.mxu0 0.0
  %1089 = vmatprep.subr.mxu0 0.0
  %1090 = vmatpush1.msra.mxu0 0.0
  %1091 = vmatprep.subr.mxu0 0.0
  %1092 = vmatpush1.msra.mxu0 0.0
  %1093 = vmatprep.subr.mxu0 0.0
  %1094 = vmatpush1.msra.mxu0 0.0
  %1095 = vmatprep.subr.mxu0 0.0
  %1096 = vmatpush1.msra.mxu0 0.0
  %1097 = vmatprep.subr.mxu0 0.0
  %1098 = vmatpush1.msra.mxu0 0.0
  %1099 = vmatprep.subr.mxu0 0.0
  %1100 = vmatpush1.msra.mxu0 0.0
  %1101 = vmatprep.subr.mxu0 0.0
  %1102 = vmatpush1.msra.mxu0 0.0
  %1103 = vmatprep.subr.mxu0 0.0
  %1104 = vmatpush1.msra.mxu0 0.0
  %1105 = vmatprep.subr.mxu0 0.0
  %1106 = vmatpush1.msra.mxu0 0.0
  %1107 = vmatprep.subr.mxu0 0.0
  %1108 = vmatpush1.msra.mxu0 0.0
  %1109 = vmatprep.mubr.f32.mxu0 0.0
  %1110 = vmatmul.mubr.f32.gmra.mrb[0].mxu0 %v963
  %v1111 = vpop.f32.mrb[0].mxu0
  %v1112 = vadd.f32 %v954, %v1111
  %v1113 = vpop.f32.mrb[0].mxu0
  %v1114 = vadd.f32 %v954, %v1113
  %1115 = vmatprep.mubr.f32.mxu0 0.0
  %1116 = vmatmul.mubr.f32.gmra.mrb[0].mxu0 %v966
  %v1117 = vpop.f32.mrb[0].mxu0
  %v1118 = vadd.f32 %v959, %v1117
  %v1119 = vpop.f32.mrb[0].mxu0
  %v1120 = vadd.f32 %v959, %v1119
  %1121 = vdwg.mxu0
  %v1122 = vadd.f32 %v582, %v1035
  %v1123 = vadd.f32 %v584, %v1037
  %v1124 = vadd.f32 %v659, %v1112
  %v1125 = vadd.f32 %v661, %v1114
  %v1126 = vadd.f32 %v588, %v1041
  %v1127 = vadd.f32 %v590, %v1043
  %v1128 = vadd.f32 %v665, %v1118
  %v1129 = vadd.f32 %v667, %v1120
  %1130 = vrot.lane.b32.xlu0 %v1122, 17
  %v1131 = vpop.permute.xlu0 %1130
  %1132 = vrot.lane.b32.xlu0 %v1126, 17
  %v1133 = vpop.permute.xlu0 %1132
  %1134 = vrot.lane.b32.xlu0 %v1123, 17
  %v1135 = vpop.permute.xlu0 %1134
  %1136 = vrot.lane.b32.xlu0 %v1127, 17
  %v1137 = vpop.permute.xlu0 %1136
  %1138 = vrot.lane.b32.xlu0 %v1124, 17
  %v1139 = vpop.permute.xlu0 %1138
  %1140 = vrot.lane.b32.xlu0 %v1128, 17
  %v1141 = vpop.permute.xlu0 %1140
  %1142 = vrot.lane.b32.xlu0 %v1125, 17
  %v1143 = vpop.permute.xlu0 %1142
  %1144 = vrot.lane.b32.xlu0 %v1129, 17
  %v1145 = vpop.permute.xlu0 %1144
  %v1146 = vsel %vm82, %v1139, %v1143
  %v1147 = vsel %vm82, %v1141, %v1145
  %v1148 = vsel %vm82, %v1135, %v1139
  %v1149 = vsel %vm82, %v1137, %v1141
  %v1150 = vsel %vm82, %v1131, %v1135
  %v1151 = vsel %vm82, %v1133, %v1137
  %v1152 = vsel %vm82, %v1143, %v1131
  %v1153 = vsel %vm82, %v1145, %v1133
  %v1154 = vmul.f32 %v1152, %v95
  %v1155 = vmul.f32 %v1150, %v99
  %v1156 = vmul.f32 %v1148, %v103
  %v1157 = vmul.f32 %v1146, %v107
  %v1158 = vmul.f32 %v1153, %v95
  %v1159 = vmul.f32 %v1151, %v99
  %v1160 = vmul.f32 %v1149, %v103
  %v1161 = vmul.f32 %v1147, %v107
  %1162 = vrot.lane.b32.xlu0 %v1122, 16
  %v1163 = vpop.permute.xlu0 %1162
  %1164 = vrot.lane.b32.xlu0 %v1126, 16
  %v1165 = vpop.permute.xlu0 %1164
  %1166 = vrot.lane.b32.xlu0 %v1123, 16
  %v1167 = vpop.permute.xlu0 %1166
  %1168 = vrot.lane.b32.xlu0 %v1127, 16
  %v1169 = vpop.permute.xlu0 %1168
  %1170 = vrot.lane.b32.xlu0 %v1124, 16
  %v1171 = vpop.permute.xlu0 %1170
  %1172 = vrot.lane.b32.xlu0 %v1128, 16
  %v1173 = vpop.permute.xlu0 %1172
  %1174 = vrot.lane.b32.xlu0 %v1125, 16
  %v1175 = vpop.permute.xlu0 %1174
  %1176 = vrot.lane.b32.xlu0 %v1129, 16
  %v1177 = vpop.permute.xlu0 %1176
  %v1178 = vsel %vm136, %v1171, %v1175
  %v1179 = vsel %vm136, %v1173, %v1177
  %v1180 = vsel %vm136, %v1167, %v1171
  %v1181 = vsel %vm136, %v1169, %v1173
  %v1182 = vsel %vm136, %v1163, %v1167
  %v1183 = vsel %vm136, %v1165, %v1169
  %v1184 = vsel %vm136, %v1175, %v1163
  %v1185 = vsel %vm136, %v1177, %v1165
  %v1186 = vmul.f32 %v1184, %v149
  %v1187 = vmul.f32 %v1182, %v153
  %v1188 = vmul.f32 %v1180, %v157
  %v1189 = vmul.f32 %v1178, %v161
  %v1190 = vmul.f32 %v1185, %v149
  %v1191 = vmul.f32 %v1183, %v153
  %v1192 = vmul.f32 %v1181, %v157
  %v1193 = vmul.f32 %v1179, %v161
  %1194 = vrot.lane.b32.xlu0 %v1122, 15
  %v1195 = vpop.permute.xlu0 %1194
  %1196 = vrot.lane.b32.xlu0 %v1126, 15
  %v1197 = vpop.permute.xlu0 %1196
  %1198 = vrot.lane.b32.xlu0 %v1123, 15
  %v1199 = vpop.permute.xlu0 %1198
  %1200 = vrot.lane.b32.xlu0 %v1127, 15
  %v1201 = vpop.permute.xlu0 %1200
  %1202 = vrot.lane.b32.xlu0 %v1124, 15
  %v1203 = vpop.permute.xlu0 %1202
  %1204 = vrot.lane.b32.xlu0 %v1128, 15
  %v1205 = vpop.permute.xlu0 %1204
  %1206 = vrot.lane.b32.xlu0 %v1125, 15
  %v1207 = vpop.permute.xlu0 %1206
  %1208 = vrot.lane.b32.xlu0 %v1129, 15
  %v1209 = vpop.permute.xlu0 %1208
  %v1210 = vsel %vm190, %v1203, %v1207
  %v1211 = vsel %vm190, %v1205, %v1209
  %v1212 = vsel %vm190, %v1199, %v1203
  %v1213 = vsel %vm190, %v1201, %v1205
  %v1214 = vsel %vm190, %v1195, %v1199
  %v1215 = vsel %vm190, %v1197, %v1201
  %v1216 = vsel %vm190, %v1207, %v1195
  %v1217 = vsel %vm190, %v1209, %v1197
  %v1218 = vmul.f32 %v1216, %v203
  %v1219 = vmul.f32 %v1214, %v207
  %v1220 = vmul.f32 %v1212, %v211
  %v1221 = vmul.f32 %v1210, %v215
  %v1222 = vmul.f32 %v1217, %v203
  %v1223 = vmul.f32 %v1215, %v207
  %v1224 = vmul.f32 %v1213, %v211
  %v1225 = vmul.f32 %v1211, %v215
  %1226 = vrot.lane.b32.xlu0 %v1122, 1
  %v1227 = vpop.permute.xlu0 %1226
  %1228 = vrot.lane.b32.xlu0 %v1126, 1
  %v1229 = vpop.permute.xlu0 %1228
  %1230 = vrot.lane.b32.xlu0 %v1123, 1
  %v1231 = vpop.permute.xlu0 %1230
  %1232 = vrot.lane.b32.xlu0 %v1127, 1
  %v1233 = vpop.permute.xlu0 %1232
  %1234 = vrot.lane.b32.xlu0 %v1124, 1
  %v1235 = vpop.permute.xlu0 %1234
  %1236 = vrot.lane.b32.xlu0 %v1128, 1
  %v1237 = vpop.permute.xlu0 %1236
  %1238 = vrot.lane.b32.xlu0 %v1125, 1
  %v1239 = vpop.permute.xlu0 %1238
  %1240 = vrot.lane.b32.xlu0 %v1129, 1
  %v1241 = vpop.permute.xlu0 %1240
  %v1242 = vsel %vm244, %v1235, %v1239
  %v1243 = vsel %vm244, %v1237, %v1241
  %v1244 = vsel %vm244, %v1231, %v1235
  %v1245 = vsel %vm244, %v1233, %v1237
  %v1246 = vsel %vm244, %v1227, %v1231
  %v1247 = vsel %vm244, %v1229, %v1233
  %v1248 = vsel %vm244, %v1239, %v1227
  %v1249 = vsel %vm244, %v1241, %v1229
  %v1250 = vmul.f32 %v1248, %v257
  %v1251 = vmul.f32 %v1246, %v261
  %v1252 = vmul.f32 %v1244, %v265
  %v1253 = vmul.f32 %v1242, %v269
  %v1254 = vmul.f32 %v1249, %v257
  %v1255 = vmul.f32 %v1247, %v261
  %v1256 = vmul.f32 %v1245, %v265
  %v1257 = vmul.f32 %v1243, %v269
  %1258 = vrot.lane.b32.xlu0 %v1122, 127
  %v1259 = vpop.permute.xlu0 %1258
  %1260 = vrot.lane.b32.xlu0 %v1126, 127
  %v1261 = vpop.permute.xlu0 %1260
  %1262 = vrot.lane.b32.xlu0 %v1123, 127
  %v1263 = vpop.permute.xlu0 %1262
  %1264 = vrot.lane.b32.xlu0 %v1127, 127
  %v1265 = vpop.permute.xlu0 %1264
  %1266 = vrot.lane.b32.xlu0 %v1124, 127
  %v1267 = vpop.permute.xlu0 %1266
  %1268 = vrot.lane.b32.xlu0 %v1128, 127
  %v1269 = vpop.permute.xlu0 %1268
  %1270 = vrot.lane.b32.xlu0 %v1125, 127
  %v1271 = vpop.permute.xlu0 %1270
  %1272 = vrot.lane.b32.xlu0 %v1129, 127
  %v1273 = vpop.permute.xlu0 %1272
  %v1274 = vsel %vm298, %v1267, %v1271
  %v1275 = vsel %vm298, %v1269, %v1273
  %v1276 = vsel %vm298, %v1263, %v1267
  %v1277 = vsel %vm298, %v1265, %v1269
  %v1278 = vsel %vm298, %v1259, %v1263
  %v1279 = vsel %vm298, %v1261, %v1265
  %v1280 = vsel %vm298, %v1271, %v1259
  %v1281 = vsel %vm298, %v1273, %v1261
  %v1282 = vmul.f32 %v1278, %v311
  %v1283 = vmul.f32 %v1276, %v315
  %v1284 = vmul.f32 %v1274, %v319
  %v1285 = vmul.f32 %v1280, %v323
  %v1286 = vmul.f32 %v1279, %v311
  %v1287 = vmul.f32 %v1277, %v315
  %v1288 = vmul.f32 %v1275, %v319
  %v1289 = vmul.f32 %v1281, %v323
  %1290 = vrot.lane.b32.xlu0 %v1122, 113
  %v1291 = vpop.permute.xlu0 %1290
  %1292 = vrot.lane.b32.xlu0 %v1126, 113
  %v1293 = vpop.permute.xlu0 %1292
  %1294 = vrot.lane.b32.xlu0 %v1123, 113
  %v1295 = vpop.permute.xlu0 %1294
  %1296 = vrot.lane.b32.xlu0 %v1127, 113
  %v1297 = vpop.permute.xlu0 %1296
  %1298 = vrot.lane.b32.xlu0 %v1124, 113
  %v1299 = vpop.permute.xlu0 %1298
  %1300 = vrot.lane.b32.xlu0 %v1128, 113
  %v1301 = vpop.permute.xlu0 %1300
  %1302 = vrot.lane.b32.xlu0 %v1125, 113
  %v1303 = vpop.permute.xlu0 %1302
  %1304 = vrot.lane.b32.xlu0 %v1129, 113
  %v1305 = vpop.permute.xlu0 %1304
  %v1306 = vsel %vm352, %v1299, %v1303
  %v1307 = vsel %vm352, %v1301, %v1305
  %v1308 = vsel %vm352, %v1295, %v1299
  %v1309 = vsel %vm352, %v1297, %v1301
  %v1310 = vsel %vm352, %v1291, %v1295
  %v1311 = vsel %vm352, %v1293, %v1297
  %v1312 = vsel %vm352, %v1303, %v1291
  %v1313 = vsel %vm352, %v1305, %v1293
  %v1314 = vmul.f32 %v1310, %v365
  %v1315 = vmul.f32 %v1308, %v369
  %v1316 = vmul.f32 %v1306, %v373
  %v1317 = vmul.f32 %v1312, %v377
  %v1318 = vmul.f32 %v1311, %v365
  %v1319 = vmul.f32 %v1309, %v369
  %v1320 = vmul.f32 %v1307, %v373
  %v1321 = vmul.f32 %v1313, %v377
  %1322 = vrot.lane.b32.xlu0 %v1122, 112
  %v1323 = vpop.permute.xlu0 %1322
  %1324 = vrot.lane.b32.xlu0 %v1126, 112
  %v1325 = vpop.permute.xlu0 %1324
  %1326 = vrot.lane.b32.xlu0 %v1123, 112
  %v1327 = vpop.permute.xlu0 %1326
  %1328 = vrot.lane.b32.xlu0 %v1127, 112
  %v1329 = vpop.permute.xlu0 %1328
  %1330 = vrot.lane.b32.xlu0 %v1124, 112
  %v1331 = vpop.permute.xlu0 %1330
  %1332 = vrot.lane.b32.xlu0 %v1128, 112
  %v1333 = vpop.permute.xlu0 %1332
  %1334 = vrot.lane.b32.xlu0 %v1125, 112
  %v1335 = vpop.permute.xlu0 %1334
  %1336 = vrot.lane.b32.xlu0 %v1129, 112
  %v1337 = vpop.permute.xlu0 %1336
  %v1338 = vsel %vm406, %v1331, %v1335
  %v1339 = vsel %vm406, %v1333, %v1337
  %v1340 = vsel %vm406, %v1327, %v1331
  %v1341 = vsel %vm406, %v1329, %v1333
  %v1342 = vsel %vm406, %v1323, %v1327
  %v1343 = vsel %vm406, %v1325, %v1329
  %v1344 = vsel %vm406, %v1335, %v1323
  %v1345 = vsel %vm406, %v1337, %v1325
  %v1346 = vmul.f32 %v1342, %v419
  %v1347 = vmul.f32 %v1340, %v423
  %v1348 = vmul.f32 %v1338, %v427
  %v1349 = vmul.f32 %v1344, %v431
  %v1350 = vmul.f32 %v1343, %v419
  %v1351 = vmul.f32 %v1341, %v423
  %v1352 = vmul.f32 %v1339, %v427
  %v1353 = vmul.f32 %v1345, %v431
  %1354 = vrot.lane.b32.xlu0 %v1122, 111
  %v1355 = vpop.permute.xlu0 %1354
  %1356 = vrot.lane.b32.xlu0 %v1126, 111
  %v1357 = vpop.permute.xlu0 %1356
  %1358 = vrot.lane.b32.xlu0 %v1123, 111
  %v1359 = vpop.permute.xlu0 %1358
  %1360 = vrot.lane.b32.xlu0 %v1127, 111
  %v1361 = vpop.permute.xlu0 %1360
  %1362 = vrot.lane.b32.xlu0 %v1124, 111
  %v1363 = vpop.permute.xlu0 %1362
  %1364 = vrot.lane.b32.xlu0 %v1128, 111
  %v1365 = vpop.permute.xlu0 %1364
  %1366 = vrot.lane.b32.xlu0 %v1125, 111
  %v1367 = vpop.permute.xlu0 %1366
  %1368 = vrot.lane.b32.xlu0 %v1129, 111
  %v1369 = vpop.permute.xlu0 %1368
  %v1370 = vsel %vm460, %v1363, %v1367
  %v1371 = vsel %vm460, %v1365, %v1369
  %v1372 = vsel %vm460, %v1359, %v1363
  %v1373 = vsel %vm460, %v1361, %v1365
  %v1374 = vsel %vm460, %v1355, %v1359
  %v1375 = vsel %vm460, %v1357, %v1361
  %v1376 = vsel %vm460, %v1367, %v1355
  %v1377 = vsel %vm460, %v1369, %v1357
  %v1378 = vmul.f32 %v1374, %v473
  %v1379 = vmul.f32 %v1372, %v477
  %v1380 = vmul.f32 %v1370, %v481
  %v1381 = vmul.f32 %v1376, %v485
  %v1382 = vmul.f32 %v1375, %v473
  %v1383 = vmul.f32 %v1373, %v477
  %v1384 = vmul.f32 %v1371, %v481
  %v1385 = vmul.f32 %v1377, %v485
  %1386 = vmatprep.subr.mxu0 %v1155
  %1387 = vmatpush1.msra.mxu0 %v1154
  %1388 = vmatprep.subr.mxu0 %v1159
  %1389 = vmatpush1.msra.mxu0 %v1158
  %1390 = vmatprep.subr.mxu0 %v1187
  %1391 = vmatpush1.msra.mxu0 %v1186
  %1392 = vmatprep.subr.mxu0 %v1191
  %1393 = vmatpush1.msra.mxu0 %v1190
  %1394 = vmatprep.subr.mxu0 %v1219
  %1395 = vmatpush1.msra.mxu0 %v1218
  %1396 = vmatprep.subr.mxu0 %v1223
  %1397 = vmatpush1.msra.mxu0 %v1222
  %1398 = vmatprep.subr.mxu0 %v1251
  %1399 = vmatpush1.msra.mxu0 %v1250
  %1400 = vmatprep.subr.mxu0 %v1255
  %1401 = vmatpush1.msra.mxu0 %v1254
  %1402 = vmatprep.subr.mxu0 %v1123
  %1403 = vmatpush1.msra.mxu0 %v1122
  %1404 = vmatprep.subr.mxu0 %v1127
  %1405 = vmatpush1.msra.mxu0 %v1126
  %1406 = vmatprep.subr.mxu0 %v1283
  %1407 = vmatpush1.msra.mxu0 %v1282
  %1408 = vmatprep.subr.mxu0 %v1287
  %1409 = vmatpush1.msra.mxu0 %v1286
  %1410 = vmatprep.subr.mxu0 %v1315
  %1411 = vmatpush1.msra.mxu0 %v1314
  %1412 = vmatprep.subr.mxu0 %v1319
  %1413 = vmatpush1.msra.mxu0 %v1318
  %1414 = vmatprep.subr.mxu0 %v1347
  %1415 = vmatpush1.msra.mxu0 %v1346
  %1416 = vmatprep.subr.mxu0 %v1351
  %1417 = vmatpush1.msra.mxu0 %v1350
  %1418 = vmatprep.subr.mxu0 %v1379
  %1419 = vmatpush1.msra.mxu0 %v1378
  %1420 = vmatprep.subr.mxu0 %v1383
  %1421 = vmatpush1.msra.mxu0 %v1382
  %1422 = vmatprep.subr.mxu0 0.0
  %1423 = vmatpush1.msra.mxu0 0.0
  %1424 = vmatprep.subr.mxu0 0.0
  %1425 = vmatpush1.msra.mxu0 0.0
  %1426 = vmatprep.subr.mxu0 0.0
  %1427 = vmatpush1.msra.mxu0 0.0
  %1428 = vmatprep.subr.mxu0 0.0
  %1429 = vmatpush1.msra.mxu0 0.0
  %1430 = vmatprep.subr.mxu0 0.0
  %1431 = vmatpush1.msra.mxu0 0.0
  %1432 = vmatprep.subr.mxu0 0.0
  %1433 = vmatpush1.msra.mxu0 0.0
  %1434 = vmatprep.subr.mxu0 0.0
  %1435 = vmatpush1.msra.mxu0 0.0
  %1436 = vmatprep.subr.mxu0 0.0
  %1437 = vmatpush1.msra.mxu0 0.0
  %1438 = vmatprep.subr.mxu0 0.0
  %1439 = vmatpush1.msra.mxu0 0.0
  %1440 = vmatprep.subr.mxu0 0.0
  %1441 = vmatpush1.msra.mxu0 0.0
  %1442 = vmatprep.subr.mxu0 0.0
  %1443 = vmatpush1.msra.mxu0 0.0
  %1444 = vmatprep.subr.mxu0 0.0
  %1445 = vmatpush1.msra.mxu0 0.0
  %1446 = vmatprep.subr.mxu0 0.0
  %1447 = vmatpush1.msra.mxu0 0.0
  %1448 = vmatprep.subr.mxu0 0.0
  %1449 = vmatpush1.msra.mxu0 0.0
  %1450 = vmatprep.mubr.f32.mxu0 %v510
  %1451 = vmatmul.mubr.f32.gmra.mrb[0].mxu0 %v44
  %v1452 = vpop.f32.mrb[0].mxu0
  %v1453 = vadd.f32 %v501, %v1452
  %v1454 = vpop.f32.mrb[0].mxu0
  %v1455 = vadd.f32 %v501, %v1454
  %1456 = vmatprep.mubr.f32.mxu0 %v513
  %1457 = vmatmul.mubr.f32.gmra.mrb[0].mxu0 %v46
  %v1458 = vpop.f32.mrb[0].mxu0
  %v1459 = vadd.f32 %v506, %v1458
  %v1460 = vpop.f32.mrb[0].mxu0
  %v1461 = vadd.f32 %v506, %v1460
  %1462 = vdwg.mxu0
  %1463 = vmatprep.subr.mxu0 %v1157
  %1464 = vmatpush1.msra.mxu0 %v1156
  %1465 = vmatprep.subr.mxu0 %v1161
  %1466 = vmatpush1.msra.mxu0 %v1160
  %1467 = vmatprep.subr.mxu0 %v1189
  %1468 = vmatpush1.msra.mxu0 %v1188
  %1469 = vmatprep.subr.mxu0 %v1193
  %1470 = vmatpush1.msra.mxu0 %v1192
  %1471 = vmatprep.subr.mxu0 %v1221
  %1472 = vmatpush1.msra.mxu0 %v1220
  %1473 = vmatprep.subr.mxu0 %v1225
  %1474 = vmatpush1.msra.mxu0 %v1224
  %1475 = vmatprep.subr.mxu0 %v1253
  %1476 = vmatpush1.msra.mxu0 %v1252
  %1477 = vmatprep.subr.mxu0 %v1257
  %1478 = vmatpush1.msra.mxu0 %v1256
  %1479 = vmatprep.subr.mxu0 %v1125
  %1480 = vmatpush1.msra.mxu0 %v1124
  %1481 = vmatprep.subr.mxu0 %v1129
  %1482 = vmatpush1.msra.mxu0 %v1128
  %1483 = vmatprep.subr.mxu0 %v1285
  %1484 = vmatpush1.msra.mxu0 %v1284
  %1485 = vmatprep.subr.mxu0 %v1289
  %1486 = vmatpush1.msra.mxu0 %v1288
  %1487 = vmatprep.subr.mxu0 %v1317
  %1488 = vmatpush1.msra.mxu0 %v1316
  %1489 = vmatprep.subr.mxu0 %v1321
  %1490 = vmatpush1.msra.mxu0 %v1320
  %1491 = vmatprep.subr.mxu0 %v1349
  %1492 = vmatpush1.msra.mxu0 %v1348
  %1493 = vmatprep.subr.mxu0 %v1353
  %1494 = vmatpush1.msra.mxu0 %v1352
  %1495 = vmatprep.subr.mxu0 %v1381
  %1496 = vmatpush1.msra.mxu0 %v1380
  %1497 = vmatprep.subr.mxu0 %v1385
  %1498 = vmatpush1.msra.mxu0 %v1384
  %1499 = vmatprep.subr.mxu0 0.0
  %1500 = vmatpush1.msra.mxu0 0.0
  %1501 = vmatprep.subr.mxu0 0.0
  %1502 = vmatpush1.msra.mxu0 0.0
  %1503 = vmatprep.subr.mxu0 0.0
  %1504 = vmatpush1.msra.mxu0 0.0
  %1505 = vmatprep.subr.mxu0 0.0
  %1506 = vmatpush1.msra.mxu0 0.0
  %1507 = vmatprep.subr.mxu0 0.0
  %1508 = vmatpush1.msra.mxu0 0.0
  %1509 = vmatprep.subr.mxu0 0.0
  %1510 = vmatpush1.msra.mxu0 0.0
  %1511 = vmatprep.subr.mxu0 0.0
  %1512 = vmatpush1.msra.mxu0 0.0
  %1513 = vmatprep.subr.mxu0 0.0
  %1514 = vmatpush1.msra.mxu0 0.0
  %1515 = vmatprep.subr.mxu0 0.0
  %1516 = vmatpush1.msra.mxu0 0.0
  %1517 = vmatprep.subr.mxu0 0.0
  %1518 = vmatpush1.msra.mxu0 0.0
  %1519 = vmatprep.subr.mxu0 0.0
  %1520 = vmatpush1.msra.mxu0 0.0
  %1521 = vmatprep.subr.mxu0 0.0
  %1522 = vmatpush1.msra.mxu0 0.0
  %1523 = vmatprep.subr.mxu0 0.0
  %1524 = vmatpush1.msra.mxu0 0.0
  %1525 = vmatprep.subr.mxu0 0.0
  %1526 = vmatpush1.msra.mxu0 0.0
  %1527 = vmatprep.mubr.f32.mxu0 %v510
  %1528 = vmatmul.mubr.f32.gmra.mrb[0].mxu0 %v44
  %v1529 = vpop.f32.mrb[0].mxu0
  %v1530 = vadd.f32 %v501, %v1529
  %v1531 = vpop.f32.mrb[0].mxu0
  %v1532 = vadd.f32 %v501, %v1531
  %1533 = vmatprep.mubr.f32.mxu0 %v513
  %1534 = vmatmul.mubr.f32.gmra.mrb[0].mxu0 %v46
  %v1535 = vpop.f32.mrb[0].mxu0
  %v1536 = vadd.f32 %v506, %v1535
  %v1537 = vpop.f32.mrb[0].mxu0
  %v1538 = vadd.f32 %v506, %v1537
  %1539 = vdwg.mxu0
  %1540 = vst [vmem:[%s8] sm:$0xff] %v1453
  %1541 = vst [vmem:[%s8 + $0x8] sm:$0xff] %v1455
  %1542 = vst [vmem:[%s8 + $0x10] sm:$0xff] %v1530
  %1543 = vst [vmem:[%s8 + $0x18] sm:$0xff] %v1532
  %1544 = vst [vmem:[%s8 + $0x20] sm:$0xff] %v1459
  %1545 = vst [vmem:[%s8 + $0x28] sm:$0xff] %v1461
  %1546 = vst [vmem:[%s8 + $0x30] sm:$0xff] %v1536
  %1547 = vst [vmem:[%s8 + $0x38] sm:$0xff] %v1538
  // Predicated region
  $region34: #{tfe_forward.1} parent=0 // pred_check
    _
  $region35: #{tfe_forward.1} parent=0 // pred_check_branch
    %1549 = sbr.rel (0) target = $region37
  $region36: #{tfe_forward.1} parent=0 // pred_region
    _
  $region37: #{tfe_forward.1} parent=0 // pred_fallthru
    _
  // Predicated region
  $region38: #{tfe_forward.1} parent=0 // pred_check
    _
  $region39: #{tfe_forward.1} parent=0 // pred_check_branch
    %1551 = sbr.rel (0) target = $region41
  $region40: #{tfe_forward.1} parent=0 // pred_region
    _
  $region41: #{tfe_forward.1} parent=0 // pred_fallthru
    _

</llo_original>
